<compile_context>
chip_gen: v7x
topology: tpu7x:2x2x1
jax: 0.10.0
libtpu: 0.0.40
codegen_flags: <defaults>
</compile_context>

<pallas_src>
import functools
import math

import jax
import jax.numpy as jnp
from jax.experimental import pallas as pl
from jax.experimental.pallas import tpu as pltpu


def _gatnet_kernel(x_ref, bias_ref, wl_ref, wr_ref, bl_ref, br_ref, amat_ref,
                   bout_ref, out_ref, h_ref, xl_ref, xr_ref, xlh_ref,
                   *, n_layers, n_nodes, tile_rows, dim, heads):
    """One (layer, destination-row-tile) grid step of the fused GATNet forward.

    refs:
      x_ref    (N, dim)      f32   input node features (read at layer 0 only)
      bias_ref (T_i, N)      f32   additive mask: 0 for edge j->i, -1e30 else
      wl_ref   (1, dim, dim) bf16  lin_l weight (current layer, streamed)
      wr_ref   (1, dim, dim) bf16  lin_r weight
      bl_ref   (1, 1, dim)   f32   lin_l bias
      br_ref   (1, 1, dim)   f32   lin_r bias
      amat_ref (1, dim, H)   bf16  block-layout per-head attention vectors
      bout_ref (1, 1, dim)   f32   GATv2Conv output bias
      out_ref  (N, dim)      f32   final output (written by last layer only)
      h_ref    (N, dim)      f32   scratch: activated features for layer l+1
      xl_ref   (N, dim)      f32   scratch: lin_l(x) for ALL source nodes
      xr_ref   (N, dim)      f32   scratch: lin_r(x) for ALL target nodes
      xlh_ref  (H, N, C)     bf16  scratch: xl split per head (aggregation)
    """
    l = pl.program_id(0)          # layer (outer, sequential)
    t = pl.program_id(1)          # destination-row tile (inner, sequential)
    out_ch = dim // heads

    # ---- once per layer: project every node with this layer's weights.
    # Scratches persist across grid steps, so later tiles of the same layer
    # reuse them (projection done once per layer, not once per tile).
    @pl.when(t == 0)
    def _project():
        def proj(x_prev):
            xb = x_prev.astype(jnp.bfloat16)                            # MXU bf16
            xl = jnp.dot(xb, wl_ref[0], preferred_element_type=jnp.float32) + bl_ref[0]
            xr = jnp.dot(xb, wr_ref[0], preferred_element_type=jnp.float32) + br_ref[0]
            xl_ref[...] = xl
            xr_ref[...] = xr
            # Head-major copy of xl for the batched aggregation matmul.
            for h in range(heads):
                xlh_ref[h, :, :] = xl[:, h * out_ch:(h + 1) * out_ch].astype(jnp.bfloat16)

        @pl.when(l == 0)
        def _():
            proj(x_ref[...])

        @pl.when(l > 0)
        def _():
            proj(h_ref[...])

    # ---- per destination-row tile ------------------------------------------
    row0 = pl.multiple_of(t * tile_rows, tile_rows)
    xl = xl_ref[...]                                    # (N, dim)    all sources j
    xr = xr_ref[pl.ds(row0, tile_rows), :]              # (T_i, dim)  targets i in tile

    # GATv2: z[i, j, :] = LeakyReLU(xl[j] + xr[i])  for edge j -> i.
    z = xl[None, :, :] + xr[:, None, :]                 # (T_i, N, dim) f32
    z = jnp.maximum(z, 0.2 * z)                         # LeakyReLU(0.2), no select

    # Raw per-head scores as ONE MXU contraction against the block-layout
    # attention matrix (replaces the old z*att + 8-lane channel sum on the VPU).
    z2 = z.astype(jnp.bfloat16).reshape(tile_rows * n_nodes, dim)
    s = jnp.dot(z2, amat_ref[0], preferred_element_type=jnp.float32)   # (T_i*N, H)
    s = s.reshape(tile_rows, n_nodes, heads)
    s = jnp.swapaxes(s, 1, 2)                           # (T_i, H, N) minor-dim swap
    s = jnp.swapaxes(s, 0, 1)                           # (H, T_i, N) leading swap

    # Masked softmax over source nodes j (lane axis).  The additive -1e30 bias
    # makes exp underflow to exactly 0 for non-edges (self-loops guarantee a
    # finite row max), so no second mask select is needed.
    s = s + bias_ref[...][None, :, :]
    m = jnp.max(s, axis=-1, keepdims=True)
    p = jnp.exp(s - m)
    denom = jnp.sum(p, axis=-1, keepdims=True)          # >= 1 (self-loop term)
    alpha = p * pl.reciprocal(denom, approx=True)       # (H, T_i, N)
    # TODO(synk): GATv2Conv attention dropout (p=0.2) is train-only; eval here.

    # Message aggregation, batched over heads on the MXU:
    #   oh[h, i, c] = sum_j alpha[h, i, j] * xl[j, h, c]
    oh = jnp.einsum('hin,hnc->hic', alpha.astype(jnp.bfloat16), xlh_ref[...],
                    preferred_element_type=jnp.float32)                # (H, T_i, C)
    o = jnp.concatenate([oh[h] for h in range(heads)], axis=-1)        # (T_i, dim)
    o = o + bout_ref[0]

    # Single lane-dense store per (layer, tile).
    @pl.when(l == n_layers - 1)
    def _write_out():
        out_ref[pl.ds(row0, tile_rows), :] = o

    @pl.when(l < n_layers - 1)
    def _write_hidden():
        # GATNet applies the activation to the INPUT of layers 1..L-1, so store
        # already-activated features for the next layer to consume.
        # TODO(synk): tanh-approx GELU; use approximate=False for erf parity.
        h_ref[pl.ds(row0, tile_rows), :] = jax.nn.gelu(o, approximate=True)


def _pick_tile_rows(n):
    """Largest multiple-of-8 divisor of n that is <= 128 (fallback: n)."""
    if n % 8 != 0:
        return n
    t = min(128, n - n % 8)
    t -= t % 8
    while t >= 8:
        if n % t == 0:
            return t
        t -= 8
    return n


def gatnet_forward(x, edge_index, layer_params, *, tile_rows=None):
    """GATNet.forward (gnn_residual='no', gnn_norm=False, add_edge_attr='no')."""
    n, dim = x.shape
    n_layers = len(layer_params)
    heads = max(int(p["heads"]) for p in layer_params)
    assert dim % heads == 0
    out_ch = dim // heads

    if tile_rows is None:
        tile_rows = _pick_tile_rows(n)
    assert n % tile_rows == 0, "n_nodes must be divisible by tile_rows"
    n_tiles = n // tile_rows

    # Dense additive edge mask: 0 where edge j->i exists (self-loops included,
    # as GATv2Conv adds them by default), -1e30 elsewhere.  Precomputed once so
    # the kernel does no int8->f32 converts / selects on the N^2 tensor.
    # TODO(synk): for large sparse graphs, a CSR / neighbor-list formulation via
    # scalar prefetch would replace this O(N^2) dense mask.
    adj = jnp.zeros((n, n), jnp.bool_)
    adj = adj.at[edge_index[1], edge_index[0]].set(True)
    adj = adj.at[jnp.arange(n), jnp.arange(n)].set(True)
    mask_bias = jnp.where(adj, 0.0, -1e30).astype(jnp.float32)

    # Stack per-layer parameters along a leading layer axis so the grid's layer
    # dimension streams them (only the current layer's weights stay resident).
    wl, wr, bl, br, bout, amat = [], [], [], [], [], []
    for p in layer_params:
        h_l, c_l = int(p["heads"]), int(p["out_ch"])
        assert h_l * c_l == dim
        wl.append(p["wl"]); wr.append(p["wr"])
        bl.append(p["bl"].reshape(1, dim)); br.append(p["br"].reshape(1, dim))
        bout.append(p["bout"].reshape(1, dim))
        att = p["att"].reshape(h_l, c_l)
        if h_l == heads:
            # Block layout: column h holds att[h] in rows [h*C, (h+1)*C).
            a = jnp.zeros((dim, heads), jnp.float32)
            for hh in range(h_l):
                a = a.at[hh * c_l:(hh + 1) * c_l, hh].set(att[hh])
        else:
            # Last layer has a single head over all dim channels.  Broadcasting
            # its att vector into every column is exactly equivalent to `heads`
            # fake heads (identical softmax per column; per-column aggregation
            # of disjoint channel slices concatenates back to the full output).
            assert h_l == 1 and c_l == dim
            a = jnp.tile(att.reshape(dim, 1), (1, heads))
        amat.append(a)

    wl = jnp.stack(wl).astype(jnp.bfloat16)        # (L, dim, dim)
    wr = jnp.stack(wr).astype(jnp.bfloat16)        # (L, dim, dim)
    bl = jnp.stack(bl).astype(jnp.float32)         # (L, 1, dim)
    br = jnp.stack(br).astype(jnp.float32)         # (L, 1, dim)
    bout = jnp.stack(bout).astype(jnp.float32)     # (L, 1, dim)
    amat = jnp.stack(amat).astype(jnp.bfloat16)    # (L, dim, heads)

    kernel = functools.partial(
        _gatnet_kernel, n_layers=n_layers, n_nodes=n, tile_rows=tile_rows,
        dim=dim, heads=heads)

    flops = n_layers * (4 * n * dim * dim            # lin_l / lin_r projections
                        + 2 * n * n * dim * heads    # score contraction
                        + 2 * n * n * dim            # aggregation
                        + 4 * n * n * dim)           # z build + LeakyReLU
    transcendentals = n_layers * (heads * n * n + n * dim)
    bytes_accessed = (2 * 4 * n * dim + 4 * n * n * n_layers
                      + n_layers * (2 * 2 * dim * dim + 2 * dim * heads + 3 * 4 * dim))

    grid_spec = pltpu.PrefetchScalarGridSpec(
        num_scalar_prefetch=0,
        grid=(n_layers, n_tiles),                                   # layer outer
        in_specs=[
            pl.BlockSpec((n, dim), lambda l, t: (0, 0)),            # x (resident)
            pl.BlockSpec((tile_rows, n), lambda l, t: (t, 0)),      # mask rows
            pl.BlockSpec((1, dim, dim), lambda l, t: (l, 0, 0)),    # wl (streamed)
            pl.BlockSpec((1, dim, dim), lambda l, t: (l, 0, 0)),    # wr
            pl.BlockSpec((1, 1, dim), lambda l, t: (l, 0, 0)),      # bl
            pl.BlockSpec((1, 1, dim), lambda l, t: (l, 0, 0)),      # br
            pl.BlockSpec((1, dim, heads), lambda l, t: (l, 0, 0)),  # att block mat
            pl.BlockSpec((1, 1, dim), lambda l, t: (l, 0, 0)),      # bout
        ],
        out_specs=pl.BlockSpec((n, dim), lambda l, t: (0, 0)),      # resident out
        scratch_shapes=[
            pltpu.VMEM((n, dim), jnp.float32),                  # activated feats
            pltpu.VMEM((n, dim), jnp.float32),                  # xl (all sources)
            pltpu.VMEM((n, dim), jnp.float32),                  # xr (all targets)
            pltpu.VMEM((heads, n, out_ch), jnp.bfloat16),       # xl, head-major
        ],
    )

    return pl.pallas_call(
        kernel,
        out_shape=jax.ShapeDtypeStruct((n, dim), jnp.float32),
        grid_spec=grid_spec,
        compiler_params=pltpu.CompilerParams(
            dimension_semantics=("arbitrary", "arbitrary"),
            vmem_limit_bytes=64 * 1024 * 1024),
        cost_estimate=pl.CostEstimate(
            flops=flops, transcendentals=transcendentals,
            bytes_accessed=bytes_accessed),
    )(x.astype(jnp.float32), mask_bias, wl, wr, bl, br, amat, bout)


def _glorot(key, shape):
    fan_in, fan_out = shape[-2], shape[-1]
    lim = math.sqrt(6.0 / (fan_in + fan_out))
    return jax.random.uniform(key, shape, jnp.float32, -lim, lim)


def init_gatnet_params(key, dim, gnn_layers, gnn_heads):
    params = []
    for i in range(gnn_layers):
        heads = gnn_heads if i != gnn_layers - 1 else 1
        out_ch = dim // heads
        hc = heads * out_ch
        k = jax.random.split(jax.random.fold_in(key, i), 4)
        params.append(dict(
            heads=heads, out_ch=out_ch,
            wl=_glorot(k[0], (dim, hc)), bl=jnp.zeros((1, hc), jnp.float32),
            wr=_glorot(k[1], (dim, hc)), br=jnp.zeros((1, hc), jnp.float32),
            att=_glorot(k[2], (heads, out_ch)),
            bout=jnp.zeros((1, hc), jnp.float32),
        ))
    return params


if __name__ == "__main__":
    key = jax.random.PRNGKey(0)
    n_nodes, dim, gnn_heads, gnn_layers, num_edges = 16, 32, 4, 2, 48

    kx, ks, kd, kp = jax.random.split(key, 4)
    x = jax.random.normal(kx, (n_nodes, dim), jnp.float32)

    # Random directed edges, no self-loops (self-loops added inside, like PyG).
    src = jax.random.randint(ks, (num_edges,), 0, n_nodes)
    dst = (src + 1 + jax.random.randint(kd, (num_edges,), 0, n_nodes - 1)) % n_nodes
    edge_index = jnp.stack([src, dst]).astype(jnp.int32)   # (2, E): [source; target]

    layer_params = init_gatnet_params(kp, dim, gnn_layers, gnn_heads)

    out = gatnet_forward(x, edge_index, layer_params, tile_rows=8)
    jax.block_until_ready(out)
    assert out.shape == (n_nodes, dim) and out.dtype == jnp.float32
    assert bool(jnp.all(jnp.isfinite(out)))
    print("KERNEL_OK")
</pallas_src>

<mosaic_0001>
module attributes {stable_mosaic.version = 11 : i64} {
  func.func @_gatnet_kernel(%arg0: i32, %arg1: i32, %arg2: memref<16x32xf32, #tpu.memory_space<vmem>>, %arg3: memref<8x16xf32, #tpu.memory_space<vmem>>, %arg4: memref<1x32x32xbf16, #tpu.memory_space<vmem>>, %arg5: memref<1x32x32xbf16, #tpu.memory_space<vmem>>, %arg6: memref<1x1x32xf32, #tpu.memory_space<vmem>>, %arg7: memref<1x1x32xf32, #tpu.memory_space<vmem>>, %arg8: memref<1x32x4xbf16, #tpu.memory_space<vmem>>, %arg9: memref<1x1x32xf32, #tpu.memory_space<vmem>>, %arg10: memref<16x32xf32, #tpu.memory_space<vmem>>, %arg11: memref<16x32xf32, #tpu.memory_space<vmem>>, %arg12: memref<16x32xf32, #tpu.memory_space<vmem>>, %arg13: memref<16x32xf32, #tpu.memory_space<vmem>>, %arg14: memref<4x16x8xbf16, #tpu.memory_space<vmem>>) attributes {dimension_semantics = [#tpu.dimension_semantics<arbitrary>, #tpu.dimension_semantics<arbitrary>], iteration_bounds = array<i64: 2, 2>, scalar_prefetch = 0 : i64, scratch_operands = 4 : i64, tpu.core_type = #tpu.core_type<tc>, window_params = [{pipeline_mode = #tpu.pipeline_mode<synchronous>, transform_indices = @transform_0, window_bounds = array<i64: 16, 32>}, {transform_indices = @transform_1, window_bounds = array<i64: 8, 16>}, {transform_indices = @transform_2, window_bounds = array<i64: 1, 32, 32>}, {transform_indices = @transform_3, window_bounds = array<i64: 1, 32, 32>}, {transform_indices = @transform_4, window_bounds = array<i64: 1, 1, 32>}, {transform_indices = @transform_5, window_bounds = array<i64: 1, 1, 32>}, {transform_indices = @transform_6, window_bounds = array<i64: 1, 32, 4>}, {transform_indices = @transform_7, window_bounds = array<i64: 1, 1, 32>}, {pipeline_mode = #tpu.pipeline_mode<synchronous>, transform_indices = @transform_8, window_bounds = array<i64: 16, 32>}]} {
    %c0_i32 = arith.constant 0 : i32
    %0 = arith.cmpi eq, %arg1, %c0_i32 : i32
    %1 = arith.extui %0 : i1 to i32
    %c0_i32_0 = arith.constant 0 : i32
    %2 = arith.cmpi ne, %1, %c0_i32_0 : i32
    scf.if %2 {
      %c0_i32_21 = arith.constant 0 : i32
      %60 = arith.cmpi eq, %arg0, %c0_i32_21 : i32
      %61 = arith.extui %60 : i1 to i32
      %c0_i32_22 = arith.constant 0 : i32
      %62 = arith.cmpi ne, %61, %c0_i32_22 : i32
      scf.if %62 {
        %c0_25 = arith.constant 0 : index
        %c0_26 = arith.constant 0 : index
        %66 = vector.load %arg2[%c0_25, %c0_26] : memref<16x32xf32, #tpu.memory_space<vmem>>, vector<16x32xf32>
        %67 = arith.truncf %66 : vector<16x32xf32> to vector<16x32xbf16>
        %c0_27 = arith.constant 0 : index
        %c0_28 = arith.constant 0 : index
        %c0_29 = arith.constant 0 : index
        %68 = vector.load %arg4[%c0_27, %c0_28, %c0_29] : memref<1x32x32xbf16, #tpu.memory_space<vmem>>, vector<1x32x32xbf16>
        %69 = vector.shape_cast %68 : vector<1x32x32xbf16> to vector<32x32xbf16>
        %cst_30 = arith.constant dense<0.000000e+00> : vector<16x32xf32>
        %70 = tpu.matmul %67, %69, %cst_30 {dimension_numbers = #tpu.dot_dimension_numbers<[1], [0], [0], [1], [0, 0, 1, 1], [], []>} : vector<16x32xbf16>, vector<32x32xbf16>, vector<16x32xf32> -> vector<16x32xf32>
        %c0_31 = arith.constant 0 : index
        %c0_32 = arith.constant 0 : index
        %c0_33 = arith.constant 0 : index
        %71 = vector.load %arg6[%c0_31, %c0_32, %c0_33] : memref<1x1x32xf32, #tpu.memory_space<vmem>>, vector<1x1x32xf32>
        %72 = vector.shape_cast %71 : vector<1x1x32xf32> to vector<1x32xf32>
        %73 = vector.broadcast %72 : vector<1x32xf32> to vector<16x32xf32>
        %74 = arith.addf %70, %73 : vector<16x32xf32>
        %c0_34 = arith.constant 0 : index
        %c0_35 = arith.constant 0 : index
        %c0_36 = arith.constant 0 : index
        %75 = vector.load %arg5[%c0_34, %c0_35, %c0_36] : memref<1x32x32xbf16, #tpu.memory_space<vmem>>, vector<1x32x32xbf16>
        %76 = vector.shape_cast %75 : vector<1x32x32xbf16> to vector<32x32xbf16>
        %cst_37 = arith.constant dense<0.000000e+00> : vector<16x32xf32>
        %77 = tpu.matmul %67, %76, %cst_37 {dimension_numbers = #tpu.dot_dimension_numbers<[1], [0], [0], [1], [0, 0, 1, 1], [], []>} : vector<16x32xbf16>, vector<32x32xbf16>, vector<16x32xf32> -> vector<16x32xf32>
        %c0_38 = arith.constant 0 : index
        %c0_39 = arith.constant 0 : index
        %c0_40 = arith.constant 0 : index
        %78 = vector.load %arg7[%c0_38, %c0_39, %c0_40] : memref<1x1x32xf32, #tpu.memory_space<vmem>>, vector<1x1x32xf32>
        %79 = vector.shape_cast %78 : vector<1x1x32xf32> to vector<1x32xf32>
        %80 = vector.broadcast %79 : vector<1x32xf32> to vector<16x32xf32>
        %81 = arith.addf %77, %80 : vector<16x32xf32>
        %c0_41 = arith.constant 0 : index
        %c0_42 = arith.constant 0 : index
        %82 = vector.load %arg12[%c0_41, %c0_42] : memref<16x32xf32, #tpu.memory_space<vmem>>, vector<16x32xf32>
        tpu.vector_store %arg12[%c0_41, %c0_42], %74 {strides = array<i32>} : memref<16x32xf32, #tpu.memory_space<vmem>>, vector<16x32xf32>,
        %c0_43 = arith.constant 0 : index
        %c0_44 = arith.constant 0 : index
        %83 = vector.load %arg13[%c0_43, %c0_44] : memref<16x32xf32, #tpu.memory_space<vmem>>, vector<16x32xf32>
        tpu.vector_store %arg13[%c0_43, %c0_44], %81 {strides = array<i32>} : memref<16x32xf32, #tpu.memory_space<vmem>>, vector<16x32xf32>,
        %84 = vector.extract_strided_slice %74 {offsets = [0, 0], sizes = [16, 8], strides = [1, 1]} : vector<16x32xf32> to vector<16x8xf32>
        %85 = arith.truncf %84 : vector<16x8xf32> to vector<16x8xbf16>
        %c0_45 = arith.constant 0 : index
        %c0_46 = arith.constant 0 : index
        %c0_47 = arith.constant 0 : index
        %86 = vector.load %arg14[%c0_45, %c0_46, %c0_47] : memref<4x16x8xbf16, #tpu.memory_space<vmem>>, vector<1x16x8xbf16>
        %87 = vector.shape_cast %86 : vector<1x16x8xbf16> to vector<16x8xbf16>
        %88 = vector.shape_cast %85 : vector<16x8xbf16> to vector<1x16x8xbf16>
        tpu.vector_store %arg14[%c0_45, %c0_46, %c0_47], %88 {strides = array<i32>} : memref<4x16x8xbf16, #tpu.memory_space<vmem>>, vector<1x16x8xbf16>,
        %89 = vector.extract_strided_slice %74 {offsets = [0, 8], sizes = [16, 8], strides = [1, 1]} : vector<16x32xf32> to vector<16x8xf32>
        %90 = arith.truncf %89 : vector<16x8xf32> to vector<16x8xbf16>
        %c1 = arith.constant 1 : index
        %c0_48 = arith.constant 0 : index
        %c0_49 = arith.constant 0 : index
        %91 = vector.load %arg14[%c1, %c0_48, %c0_49] : memref<4x16x8xbf16, #tpu.memory_space<vmem>>, vector<1x16x8xbf16>
        %92 = vector.shape_cast %91 : vector<1x16x8xbf16> to vector<16x8xbf16>
        %93 = vector.shape_cast %90 : vector<16x8xbf16> to vector<1x16x8xbf16>
        tpu.vector_store %arg14[%c1, %c0_48, %c0_49], %93 {strides = array<i32>} : memref<4x16x8xbf16, #tpu.memory_space<vmem>>, vector<1x16x8xbf16>,
        %94 = vector.extract_strided_slice %74 {offsets = [0, 16], sizes = [16, 8], strides = [1, 1]} : vector<16x32xf32> to vector<16x8xf32>
        %95 = arith.truncf %94 : vector<16x8xf32> to vector<16x8xbf16>
        %c2 = arith.constant 2 : index
        %c0_50 = arith.constant 0 : index
        %c0_51 = arith.constant 0 : index
        %96 = vector.load %arg14[%c2, %c0_50, %c0_51] : memref<4x16x8xbf16, #tpu.memory_space<vmem>>, vector<1x16x8xbf16>
        %97 = vector.shape_cast %96 : vector<1x16x8xbf16> to vector<16x8xbf16>
        %98 = vector.shape_cast %95 : vector<16x8xbf16> to vector<1x16x8xbf16>
        tpu.vector_store %arg14[%c2, %c0_50, %c0_51], %98 {strides = array<i32>} : memref<4x16x8xbf16, #tpu.memory_space<vmem>>, vector<1x16x8xbf16>,
        %99 = vector.extract_strided_slice %74 {offsets = [0, 24], sizes = [16, 8], strides = [1, 1]} : vector<16x32xf32> to vector<16x8xf32>
        %100 = arith.truncf %99 : vector<16x8xf32> to vector<16x8xbf16>
        %c3 = arith.constant 3 : index
        %c0_52 = arith.constant 0 : index
        %c0_53 = arith.constant 0 : index
        %101 = vector.load %arg14[%c3, %c0_52, %c0_53] : memref<4x16x8xbf16, #tpu.memory_space<vmem>>, vector<1x16x8xbf16>
        %102 = vector.shape_cast %101 : vector<1x16x8xbf16> to vector<16x8xbf16>
        %103 = vector.shape_cast %100 : vector<16x8xbf16> to vector<1x16x8xbf16>
        tpu.vector_store %arg14[%c3, %c0_52, %c0_53], %103 {strides = array<i32>} : memref<4x16x8xbf16, #tpu.memory_space<vmem>>, vector<1x16x8xbf16>,
      } else {
      }
      %c0_i32_23 = arith.constant 0 : i32
      %63 = arith.cmpi sgt, %arg0, %c0_i32_23 : i32
      %64 = arith.extui %63 : i1 to i32
      %c0_i32_24 = arith.constant 0 : i32
      %65 = arith.cmpi ne, %64, %c0_i32_24 : i32
      scf.if %65 {
        %c0_25 = arith.constant 0 : index
        %c0_26 = arith.constant 0 : index
        %66 = vector.load %arg11[%c0_25, %c0_26] : memref<16x32xf32, #tpu.memory_space<vmem>>, vector<16x32xf32>
        %67 = arith.truncf %66 : vector<16x32xf32> to vector<16x32xbf16>
        %c0_27 = arith.constant 0 : index
        %c0_28 = arith.constant 0 : index
        %c0_29 = arith.constant 0 : index
        %68 = vector.load %arg4[%c0_27, %c0_28, %c0_29] : memref<1x32x32xbf16, #tpu.memory_space<vmem>>, vector<1x32x32xbf16>
        %69 = vector.shape_cast %68 : vector<1x32x32xbf16> to vector<32x32xbf16>
        %cst_30 = arith.constant dense<0.000000e+00> : vector<16x32xf32>
        %70 = tpu.matmul %67, %69, %cst_30 {dimension_numbers = #tpu.dot_dimension_numbers<[1], [0], [0], [1], [0, 0, 1, 1], [], []>} : vector<16x32xbf16>, vector<32x32xbf16>, vector<16x32xf32> -> vector<16x32xf32>
        %c0_31 = arith.constant 0 : index
        %c0_32 = arith.constant 0 : index
        %c0_33 = arith.constant 0 : index
        %71 = vector.load %arg6[%c0_31, %c0_32, %c0_33] : memref<1x1x32xf32, #tpu.memory_space<vmem>>, vector<1x1x32xf32>
        %72 = vector.shape_cast %71 : vector<1x1x32xf32> to vector<1x32xf32>
        %73 = vector.broadcast %72 : vector<1x32xf32> to vector<16x32xf32>
        %74 = arith.addf %70, %73 : vector<16x32xf32>
        %c0_34 = arith.constant 0 : index
        %c0_35 = arith.constant 0 : index
        %c0_36 = arith.constant 0 : index
        %75 = vector.load %arg5[%c0_34, %c0_35, %c0_36] : memref<1x32x32xbf16, #tpu.memory_space<vmem>>, vector<1x32x32xbf16>
        %76 = vector.shape_cast %75 : vector<1x32x32xbf16> to vector<32x32xbf16>
        %cst_37 = arith.constant dense<0.000000e+00> : vector<16x32xf32>
        %77 = tpu.matmul %67, %76, %cst_37 {dimension_numbers = #tpu.dot_dimension_numbers<[1], [0], [0], [1], [0, 0, 1, 1], [], []>} : vector<16x32xbf16>, vector<32x32xbf16>, vector<16x32xf32> -> vector<16x32xf32>
        %c0_38 = arith.constant 0 : index
        %c0_39 = arith.constant 0 : index
        %c0_40 = arith.constant 0 : index
        %78 = vector.load %arg7[%c0_38, %c0_39, %c0_40] : memref<1x1x32xf32, #tpu.memory_space<vmem>>, vector<1x1x32xf32>
        %79 = vector.shape_cast %78 : vector<1x1x32xf32> to vector<1x32xf32>
        %80 = vector.broadcast %79 : vector<1x32xf32> to vector<16x32xf32>
        %81 = arith.addf %77, %80 : vector<16x32xf32>
        %c0_41 = arith.constant 0 : index
        %c0_42 = arith.constant 0 : index
        %82 = vector.load %arg12[%c0_41, %c0_42] : memref<16x32xf32, #tpu.memory_space<vmem>>, vector<16x32xf32>
        tpu.vector_store %arg12[%c0_41, %c0_42], %74 {strides = array<i32>} : memref<16x32xf32, #tpu.memory_space<vmem>>, vector<16x32xf32>,
        %c0_43 = arith.constant 0 : index
        %c0_44 = arith.constant 0 : index
        %83 = vector.load %arg13[%c0_43, %c0_44] : memref<16x32xf32, #tpu.memory_space<vmem>>, vector<16x32xf32>
        tpu.vector_store %arg13[%c0_43, %c0_44], %81 {strides = array<i32>} : memref<16x32xf32, #tpu.memory_space<vmem>>, vector<16x32xf32>,
        %84 = vector.extract_strided_slice %74 {offsets = [0, 0], sizes = [16, 8], strides = [1, 1]} : vector<16x32xf32> to vector<16x8xf32>
        %85 = arith.truncf %84 : vector<16x8xf32> to vector<16x8xbf16>
        %c0_45 = arith.constant 0 : index
        %c0_46 = arith.constant 0 : index
        %c0_47 = arith.constant 0 : index
        %86 = vector.load %arg14[%c0_45, %c0_46, %c0_47] : memref<4x16x8xbf16, #tpu.memory_space<vmem>>, vector<1x16x8xbf16>
        %87 = vector.shape_cast %86 : vector<1x16x8xbf16> to vector<16x8xbf16>
        %88 = vector.shape_cast %85 : vector<16x8xbf16> to vector<1x16x8xbf16>
        tpu.vector_store %arg14[%c0_45, %c0_46, %c0_47], %88 {strides = array<i32>} : memref<4x16x8xbf16, #tpu.memory_space<vmem>>, vector<1x16x8xbf16>,
        %89 = vector.extract_strided_slice %74 {offsets = [0, 8], sizes = [16, 8], strides = [1, 1]} : vector<16x32xf32> to vector<16x8xf32>
        %90 = arith.truncf %89 : vector<16x8xf32> to vector<16x8xbf16>
        %c1 = arith.constant 1 : index
        %c0_48 = arith.constant 0 : index
        %c0_49 = arith.constant 0 : index
        %91 = vector.load %arg14[%c1, %c0_48, %c0_49] : memref<4x16x8xbf16, #tpu.memory_space<vmem>>, vector<1x16x8xbf16>
        %92 = vector.shape_cast %91 : vector<1x16x8xbf16> to vector<16x8xbf16>
        %93 = vector.shape_cast %90 : vector<16x8xbf16> to vector<1x16x8xbf16>
        tpu.vector_store %arg14[%c1, %c0_48, %c0_49], %93 {strides = array<i32>} : memref<4x16x8xbf16, #tpu.memory_space<vmem>>, vector<1x16x8xbf16>,
        %94 = vector.extract_strided_slice %74 {offsets = [0, 16], sizes = [16, 8], strides = [1, 1]} : vector<16x32xf32> to vector<16x8xf32>
        %95 = arith.truncf %94 : vector<16x8xf32> to vector<16x8xbf16>
        %c2 = arith.constant 2 : index
        %c0_50 = arith.constant 0 : index
        %c0_51 = arith.constant 0 : index
        %96 = vector.load %arg14[%c2, %c0_50, %c0_51] : memref<4x16x8xbf16, #tpu.memory_space<vmem>>, vector<1x16x8xbf16>
        %97 = vector.shape_cast %96 : vector<1x16x8xbf16> to vector<16x8xbf16>
        %98 = vector.shape_cast %95 : vector<16x8xbf16> to vector<1x16x8xbf16>
        tpu.vector_store %arg14[%c2, %c0_50, %c0_51], %98 {strides = array<i32>} : memref<4x16x8xbf16, #tpu.memory_space<vmem>>, vector<1x16x8xbf16>,
        %99 = vector.extract_strided_slice %74 {offsets = [0, 24], sizes = [16, 8], strides = [1, 1]} : vector<16x32xf32> to vector<16x8xf32>
        %100 = arith.truncf %99 : vector<16x8xf32> to vector<16x8xbf16>
        %c3 = arith.constant 3 : index
        %c0_52 = arith.constant 0 : index
        %c0_53 = arith.constant 0 : index
        %101 = vector.load %arg14[%c3, %c0_52, %c0_53] : memref<4x16x8xbf16, #tpu.memory_space<vmem>>, vector<1x16x8xbf16>
        %102 = vector.shape_cast %101 : vector<1x16x8xbf16> to vector<16x8xbf16>
        %103 = vector.shape_cast %100 : vector<16x8xbf16> to vector<1x16x8xbf16>
        tpu.vector_store %arg14[%c3, %c0_52, %c0_53], %103 {strides = array<i32>} : memref<4x16x8xbf16, #tpu.memory_space<vmem>>, vector<1x16x8xbf16>,
      } else {
      }
    } else {
    }
    %c8_i32 = arith.constant 8 : i32
    %3 = arith.muli %arg1, %c8_i32 : i32
    %4 = tpu.assume_multiple %3, 8 : i32
    %c0 = arith.constant 0 : index
    %c0_1 = arith.constant 0 : index
    %5 = vector.load %arg12[%c0, %c0_1] : memref<16x32xf32, #tpu.memory_space<vmem>>, vector<16x32xf32>
    %6 = arith.index_cast %4 : i32 to index
    %c0_2 = arith.constant 0 : index
    %7 = vector.load %arg13[%6, %c0_2] : memref<16x32xf32, #tpu.memory_space<vmem>>, vector<8x32xf32>
    %8 = vector.shape_cast %5 : vector<16x32xf32> to vector<1x16x32xf32>
    %9 = vector.shape_cast %7 : vector<8x32xf32> to vector<8x1x32xf32>
    %10 = vector.broadcast %8 : vector<1x16x32xf32> to vector<8x16x32xf32>
    %11 = vector.broadcast %9 : vector<8x1x32xf32> to vector<8x16x32xf32>
    %12 = arith.addf %10, %11 : vector<8x16x32xf32>
    %cst = arith.constant 2.000000e-01 : f32
    %13 = vector.broadcast %cst : f32 to vector<8x16x32xf32>
    %14 = arith.mulf %13, %12 : vector<8x16x32xf32>
    %15 = arith.maximumf %12, %14 : vector<8x16x32xf32>
    %16 = arith.truncf %15 : vector<8x16x32xf32> to vector<8x16x32xbf16>
    %17 = vector.shape_cast %16 : vector<8x16x32xbf16> to vector<128x32xbf16>
    %c0_3 = arith.constant 0 : index
    %c0_4 = arith.constant 0 : index
    %c0_5 = arith.constant 0 : index
    %18 = vector.load %arg8[%c0_3, %c0_4, %c0_5] : memref<1x32x4xbf16, #tpu.memory_space<vmem>>, vector<1x32x4xbf16>
    %19 = vector.shape_cast %18 : vector<1x32x4xbf16> to vector<32x4xbf16>
    %cst_6 = arith.constant dense<0.000000e+00> : vector<128x4xf32>
    %20 = tpu.matmul %17, %19, %cst_6 {dimension_numbers = #tpu.dot_dimension_numbers<[1], [0], [0], [1], [0, 0, 1, 1], [], []>} : vector<128x32xbf16>, vector<32x4xbf16>, vector<128x4xf32> -> vector<128x4xf32>
    %21 = vector.shape_cast %20 : vector<128x4xf32> to vector<8x16x4xf32>
    %22 = tpu.transpose %21, [0, 2, 1] : vector<8x16x4xf32> -> vector<8x4x16xf32>
    %23 = tpu.transpose %22, [1, 0, 2] : vector<8x4x16xf32> -> vector<4x8x16xf32>
    %c0_7 = arith.constant 0 : index
    %c0_8 = arith.constant 0 : index
    %24 = vector.load %arg3[%c0_7, %c0_8] : memref<8x16xf32, #tpu.memory_space<vmem>>, vector<8x16xf32>
    %25 = vector.shape_cast %24 : vector<8x16xf32> to vector<1x8x16xf32>
    %26 = vector.broadcast %25 : vector<1x8x16xf32> to vector<4x8x16xf32>
    %27 = arith.addf %23, %26 : vector<4x8x16xf32>
    %cst_9 = arith.constant dense<0xFF800000> : vector<4x8xf32>
    %28 = vector.multi_reduction <maximumf>, %27, %cst_9 [2] : vector<4x8x16xf32> to vector<4x8xf32>
    %29 = vector.shape_cast %28 : vector<4x8xf32> to vector<4x8x1xf32>
    %30 = vector.broadcast %29 : vector<4x8x1xf32> to vector<4x8x16xf32>
    %31 = arith.subf %27, %30 : vector<4x8x16xf32>
    %32 = math.exp %31 : vector<4x8x16xf32>
    %cst_10 = arith.constant dense<0.000000e+00> : vector<4x8xf32>
    %33 = vector.multi_reduction <add>, %32, %cst_10 [2] : vector<4x8x16xf32> to vector<4x8xf32>
    %34 = vector.shape_cast %33 : vector<4x8xf32> to vector<4x8x1xf32>
    %35 = tpu.reciprocal %34 {approx = true} : vector<4x8x1xf32> -> vector<4x8x1xf32>
    %36 = vector.broadcast %35 : vector<4x8x1xf32> to vector<4x8x16xf32>
    %37 = arith.mulf %32, %36 : vector<4x8x16xf32>
    %38 = arith.truncf %37 : vector<4x8x16xf32> to vector<4x8x16xbf16>
    %c0_11 = arith.constant 0 : index
    %c0_12 = arith.constant 0 : index
    %c0_13 = arith.constant 0 : index
    %39 = vector.load %arg14[%c0_11, %c0_12, %c0_13] : memref<4x16x8xbf16, #tpu.memory_space<vmem>>, vector<4x16x8xbf16>
    "tpu.trace_start"() <{level = 10 : i32, message = "hin,hnc->hic"}> : () -> ()
    %cst_14 = arith.constant dense<0.000000e+00> : vector<4x8x8xf32>
    %40 = tpu.matmul %38, %39, %cst_14 {dimension_numbers = #tpu.dot_dimension_numbers<[2], [1], [1], [2], [0, 0, 0, 1, 1, 2], [0], [0]>} : vector<4x8x16xbf16>, vector<4x16x8xbf16>, vector<4x8x8xf32> -> vector<4x8x8xf32>
    "tpu.trace_stop"() : () -> ()
    %41 = vector.extract_strided_slice %40 {offsets = [0, 0, 0], sizes = [1, 8, 8], strides = [1, 1, 1]} : vector<4x8x8xf32> to vector<1x8x8xf32>
    %42 = vector.shape_cast %41 : vector<1x8x8xf32> to vector<8x8xf32>
    %43 = vector.extract_strided_slice %40 {offsets = [1, 0, 0], sizes = [1, 8, 8], strides = [1, 1, 1]} : vector<4x8x8xf32> to vector<1x8x8xf32>
    %44 = vector.shape_cast %43 : vector<1x8x8xf32> to vector<8x8xf32>
    %45 = vector.extract_strided_slice %40 {offsets = [2, 0, 0], sizes = [1, 8, 8], strides = [1, 1, 1]} : vector<4x8x8xf32> to vector<1x8x8xf32>
    %46 = vector.shape_cast %45 : vector<1x8x8xf32> to vector<8x8xf32>
    %47 = vector.extract_strided_slice %40 {offsets = [3, 0, 0], sizes = [1, 8, 8], strides = [1, 1, 1]} : vector<4x8x8xf32> to vector<1x8x8xf32>
    %48 = vector.shape_cast %47 : vector<1x8x8xf32> to vector<8x8xf32>
    %49 = tpu.concatenate %42, %44, %46, %48 in 1 : vector<8x8xf32>, vector<8x8xf32>, vector<8x8xf32>, vector<8x8xf32> -> vector<8x32xf32>
    %c0_15 = arith.constant 0 : index
    %c0_16 = arith.constant 0 : index
    %c0_17 = arith.constant 0 : index
    %50 = vector.load %arg9[%c0_15, %c0_16, %c0_17] : memref<1x1x32xf32, #tpu.memory_space<vmem>>, vector<1x1x32xf32>
    %51 = vector.shape_cast %50 : vector<1x1x32xf32> to vector<1x32xf32>
    %52 = vector.broadcast %51 : vector<1x32xf32> to vector<8x32xf32>
    %53 = arith.addf %49, %52 : vector<8x32xf32>
    %c1_i32 = arith.constant 1 : i32
    %54 = arith.cmpi eq, %arg0, %c1_i32 : i32
    %55 = arith.extui %54 : i1 to i32
    %c0_i32_18 = arith.constant 0 : i32
    %56 = arith.cmpi ne, %55, %c0_i32_18 : i32
    scf.if %56 {
      %60 = arith.index_cast %4 : i32 to index
      %c0_21 = arith.constant 0 : index
      %61 = vector.load %arg10[%60, %c0_21] : memref<16x32xf32, #tpu.memory_space<vmem>>, vector<8x32xf32>
      tpu.vector_store %arg10[%60, %c0_21], %53 {strides = array<i32>} : memref<16x32xf32, #tpu.memory_space<vmem>>, vector<8x32xf32>,
    } else {
    }
    %c1_i32_19 = arith.constant 1 : i32
    %57 = arith.cmpi slt, %arg0, %c1_i32_19 : i32
    %58 = arith.extui %57 : i1 to i32
    %c0_i32_20 = arith.constant 0 : i32
    %59 = arith.cmpi ne, %58, %c0_i32_20 : i32
    scf.if %59 {
      %60 = arith.mulf %53, %53 : vector<8x32xf32>
      %61 = arith.mulf %53, %60 : vector<8x32xf32>
      %cst_21 = arith.constant 4.471500e-02 : f32
      %62 = vector.broadcast %cst_21 : f32 to vector<8x32xf32>
      %63 = arith.mulf %62, %61 : vector<8x32xf32>
      %64 = arith.addf %53, %63 : vector<8x32xf32>
      %cst_22 = arith.constant 0.797884583 : f32
      %65 = vector.broadcast %cst_22 : f32 to vector<8x32xf32>
      %66 = arith.mulf %65, %64 : vector<8x32xf32>
      %67 = math.tanh %66 : vector<8x32xf32>
      %cst_23 = arith.constant 1.000000e+00 : f32
      %68 = vector.broadcast %cst_23 : f32 to vector<8x32xf32>
      %69 = arith.addf %68, %67 : vector<8x32xf32>
      %cst_24 = arith.constant 5.000000e-01 : f32
      %70 = vector.broadcast %cst_24 : f32 to vector<8x32xf32>
      %71 = arith.mulf %70, %69 : vector<8x32xf32>
      %72 = arith.mulf %53, %71 : vector<8x32xf32>
      %73 = arith.index_cast %4 : i32 to index
      %c0_25 = arith.constant 0 : index
      %74 = vector.load %arg11[%73, %c0_25] : memref<16x32xf32, #tpu.memory_space<vmem>>, vector<8x32xf32>
      tpu.vector_store %arg11[%73, %c0_25], %72 {strides = array<i32>} : memref<16x32xf32, #tpu.memory_space<vmem>>, vector<8x32xf32>,
    } else {
    }
    return
  }
  func.func @transform_0(%arg0: i32, %arg1: i32) -> (i32, i32) {
    %c0_i32 = arith.constant 0 : i32
    %c0_i32_0 = arith.constant 0 : i32
    %c0_i32_1 = arith.constant 0 : i32
    return %c0_i32, %c0_i32_0 : i32, i32
  }
  func.func @transform_1(%arg0: i32, %arg1: i32) -> (i32, i32) {
    %c0_i32 = arith.constant 0 : i32
    %c0_i32_0 = arith.constant 0 : i32
    return %arg1, %c0_i32 : i32, i32
  }
  func.func @transform_2(%arg0: i32, %arg1: i32) -> (i32, i32, i32) {
    %c0_i32 = arith.constant 0 : i32
    %c0_i32_0 = arith.constant 0 : i32
    %c0_i32_1 = arith.constant 0 : i32
    return %arg0, %c0_i32, %c0_i32_0 : i32, i32, i32
  }
  func.func @transform_3(%arg0: i32, %arg1: i32) -> (i32, i32, i32) {
    %c0_i32 = arith.constant 0 : i32
    %c0_i32_0 = arith.constant 0 : i32
    %c0_i32_1 = arith.constant 0 : i32
    return %arg0, %c0_i32, %c0_i32_0 : i32, i32, i32
  }
  func.func @transform_4(%arg0: i32, %arg1: i32) -> (i32, i32, i32) {
    %c0_i32 = arith.constant 0 : i32
    %c0_i32_0 = arith.constant 0 : i32
    %c0_i32_1 = arith.constant 0 : i32
    return %arg0, %c0_i32, %c0_i32_0 : i32, i32, i32
  }
  func.func @transform_5(%arg0: i32, %arg1: i32) -> (i32, i32, i32) {
    %c0_i32 = arith.constant 0 : i32
    %c0_i32_0 = arith.constant 0 : i32
    %c0_i32_1 = arith.constant 0 : i32
    return %arg0, %c0_i32, %c0_i32_0 : i32, i32, i32
  }
  func.func @transform_6(%arg0: i32, %arg1: i32) -> (i32, i32, i32) {
    %c0_i32 = arith.constant 0 : i32
    %c0_i32_0 = arith.constant 0 : i32
    %c0_i32_1 = arith.constant 0 : i32
    return %arg0, %c0_i32, %c0_i32_0 : i32, i32, i32
  }
  func.func @transform_7(%arg0: i32, %arg1: i32) -> (i32, i32, i32) {
    %c0_i32 = arith.constant 0 : i32
    %c0_i32_0 = arith.constant 0 : i32
    %c0_i32_1 = arith.constant 0 : i32
    return %arg0, %c0_i32, %c0_i32_0 : i32, i32, i32
  }
  func.func @transform_8(%arg0: i32, %arg1: i32) -> (i32, i32) {
    %c0_i32 = arith.constant 0 : i32
    %c0_i32_0 = arith.constant 0 : i32
    %c0_i32_1 = arith.constant 0 : i32
    return %c0_i32, %c0_i32_0 : i32, i32
  }
}

</mosaic_0001>

<llo_original>
// kernel: tpu_custom_call.1
$region0: #{tpu_custom_call.1}
  #allocation0 [shape = 'u32[]', space=smem, size = 0x4, offset = 0x4, fixed_abs, tag = 'smem constant byte address 0x4 - core index']
  #allocation1 [shape = 'u32[144,128]{1,0:T(1,128)}', space=vmem, size = 0x12000, scoped, tag = 'internal scratch']
  #allocation2 [shape = 'f32[16,32]{1,0:T(8,128)}', space=vmem, size = 0x2000, scoped, tag = 'scratch operand']
  #allocation3 [shape = 'f32[16,32]{1,0:T(8,128)}', space=vmem, size = 0x2000, scoped, tag = 'scratch operand']
  #allocation4 [shape = 'f32[16,32]{1,0:T(8,128)}', space=vmem, size = 0x2000, scoped, tag = 'scratch operand']
  #allocation5 [shape = 'bf16[4,16,8]{2,1,0:T(16,128)(2,1)}', space=vmem, size = 0x4000, scoped, tag = 'scratch operand']
  %s0 = inlined_call_operand.hbm [shape: f32[16,32], index: 0, kind: input, shape index: {}]
  %s1 = inlined_call_operand.hbm [shape: f32[16,16], index: 1, kind: input, shape index: {}]
  %s2 = inlined_call_operand.hbm [shape: bf16[2,32,32], index: 2, kind: input, shape index: {}]
  %s3 = inlined_call_operand.hbm [shape: bf16[2,32,32], index: 3, kind: input, shape index: {}]
  %s4 = inlined_call_operand.hbm [shape: f32[2,1,32], index: 4, kind: input, shape index: {}]
  %s5 = inlined_call_operand.hbm [shape: f32[2,1,32], index: 5, kind: input, shape index: {}]
  %s6 = inlined_call_operand.hbm [shape: bf16[2,32,4], index: 6, kind: input, shape index: {}]
  %s7 = inlined_call_operand.hbm [shape: f32[2,1,32], index: 7, kind: input, shape index: {}]
  %s8 = inlined_call_operand.hbm [shape: f32[16,32], index: 8, kind: output, shape index: {}]
  %s9 = sld [smem:[#allocation0]]
  $region117: #{tpu_custom_call.1} parent=0
    _
  %s11 = ssub.s32 1, %s9
  %s12 = scalar_select 0, %s11, %s9
  $region1: #{tpu_custom_call.1} parent=0
    #allocation6 [shape = 'u8[8192]{0}', space=vmem, size = 0x2000, scoped, tag = 'input window, operand 0, single buffered']
    #allocation7 [shape = 's32[2]{0}', space=sflag, size = 0x8, scoped, tag = 'scoped memory for tpu_custom_call.1']
    #allocation8 [shape = 's32[2]{0}', space=sflag, size = 0x8, scoped, tag = 'scoped memory for tpu_custom_call.1']
    #allocation9 [shape = 'u8[8192]{0}', space=vmem, size = 0x2000, scoped, tag = 'input window, operand 1']
    #allocation10 [shape = 's32[2]{0}', space=sflag, size = 0x8, scoped, tag = 'scoped memory for tpu_custom_call.1']
    #allocation11 [shape = 'u8[16384]{0}', space=vmem, size = 0x4000, scoped, tag = 'input window, operand 2']
    #allocation12 [shape = 'u8[16384]{0}', space=vmem, size = 0x4000, scoped, tag = 'input window, operand 3']
    #allocation13 [shape = 's32[2]{0}', space=sflag, size = 0x8, scoped, tag = 'scoped memory for tpu_custom_call.1']
    #allocation14 [shape = 'u8[1024]{0}', space=vmem, size = 0x400, scoped, tag = 'input window, operand 4']
    #allocation15 [shape = 'u8[1024]{0}', space=vmem, size = 0x400, scoped, tag = 'input window, operand 5']
    #allocation16 [shape = 's32[2]{0}', space=sflag, size = 0x8, scoped, tag = 'scoped memory for tpu_custom_call.1']
    #allocation17 [shape = 'u8[16384]{0}', space=vmem, size = 0x4000, scoped, tag = 'input window, operand 6']
    #allocation18 [shape = 'u8[1024]{0}', space=vmem, size = 0x400, scoped, tag = 'input window, operand 7']
    #allocation19 [shape = 's32[2]{0}', space=sflag, size = 0x8, scoped, tag = 'scoped memory for tpu_custom_call.1']
    #allocation20 [shape = 'u8[8192]{0}', space=vmem, size = 0x2000, scoped, tag = 'output window, operand 0, single buffered']
    %13 = vsyncpa [#allocation7], 0
    %14 = vsyncpa [#allocation10], 0
    %s15 = scalar_lea.sflag [#allocation10], 1
    %16 = vsyncpa %s15, 0
    %17 = vsyncpa [#allocation13], 0
    %s18 = scalar_lea.sflag [#allocation13], 1
    %19 = vsyncpa %s18, 0
    %20 = vsyncpa [#allocation16], 0
    %s21 = scalar_lea.sflag [#allocation16], 1
    %22 = vsyncpa %s21, 0
    %23 = vsyncpa [#allocation19], 0
    %s24 = scalar_lea.sflag [#allocation19], 1
    %25 = vsyncpa %s24, 0
    %26 = vsyncpa [#allocation8], 0
    loop: start=0, step=1, limit=6
    $region2: #{tpu_custom_call.1} parent=1 // loop_pre_header
      _
    $region3: #{tpu_custom_call.1} parent=1 // loop_header
      %s28 = sphi 0, %s32
      %p29 = scmp.ge.s32.totalorder %s28, 6
      %s35 = sphi 0, %s47
      %s36 = sphi 0, %s43
      %s37 = sphi 0, %s35
      %s38 = sphi 0, %s36
      %s39 = sphi 0, %s37
      %s40 = sphi 0, %s38
      %s48 = sphi 0, %s48
      %s50 = sphi 0, %s48
      %s51 = sphi 0, %s50
      %s65 = sphi 0, %s51
      %s71 = sphi 0, %s73
      %s74 = sphi 0, %s71
      %s75 = sphi 0, %s74
      %s91 = sphi 0, %s75
      %s97 = sphi 0, %s99
      %s100 = sphi 0, %s97
      %s101 = sphi 0, %s100
      %s117 = sphi 0, %s101
      %s123 = sphi 0, %s125
      %s126 = sphi 0, %s123
      %s127 = sphi 0, %s126
      %s143 = sphi 0, %s127
      %s149 = sphi 0, %s151
      %s152 = sphi 0, %s149
      %s153 = sphi 0, %s152
      %s169 = sphi 0, %s153
      %s175 = sphi 0, %s177
      %s178 = sphi 0, %s175
      %s179 = sphi 0, %s178
      %s195 = sphi 0, %s179
      %s201 = sphi 0, %s203
      %s204 = sphi 0, %s201
      %s205 = sphi 0, %s204
      %s221 = sphi 0, %s205
      %s227 = sphi 0, %s229
      %s230 = sphi 0, %s227
      %s231 = sphi 0, %s230
      %s247 = sphi 0, %s231
      %s251 = sphi 0, %s251
      %s253 = sphi 0, %s251
      %s254 = sphi 0, %s253
      %s268 = sphi 0, %s254
    $region4: #{tpu_custom_call.1} parent=1 // loop_header_branch
      %31 = sbr.rel (%p29) target = $region8
    $region5: #{tpu_custom_call.1} parent=1 // loop_body
      %s33 = ssub.s32 %s28, 1
      %s34 = ssub.s32 %s28, 2
      %s41 = sadd.s32 1, %s36
      %p42 = scmp.ge.s32.totalorder %s41, 2
      %s43 = scalar_select %p42, 0, %s41
      %s44 = sadd.s32 1, %s35
      %s45 = scalar_select %p42, %s44, %s35
      %p46 = scmp.ge.s32.totalorder %s45, 2
      %s47 = scalar_select %p46, 0, %s45
      %s49 = sadd.s32 %s48, 1
      %p52 = scmp.eq.s32.totalorder %s28, 3
      %p53 = scmp.ne.s32.totalorder %s48, %s50
      %p54 = scmp.eq.s32.totalorder %s28, 0
      %p55 = por %p53, %p54
      %p56 = scmp.ne.s32.totalorder %s48, %s50
      %p57 = scmp.eq.s32.totalorder %s33, 3
      %p58 = por %p56, %p57
      %p59 = scmp.ne.s32.totalorder %s50, %s51
      %p60 = scmp.eq.s32.totalorder %s33, 0
      %p61 = por %p59, %p60
      %p62 = scmp.ne.s32.totalorder %s50, %s51
      %p63 = scmp.eq.s32.totalorder %s34, 3
      %p64 = por %p62, %p63
      %p66 = scmp.ne.s32.totalorder %s51, %s65
      %p67 = scmp.eq.s32.totalorder %s34, 0
      %p68 = por %p66, %p67
      %s69 = ssub.s32 %s36, %s43
      %p70 = scmp.eq.s32.totalorder %s69, 0
      %s72 = sadd.s32 %s71, 1
      %s73 = scalar_select %p70, %s71, %s72
      %p76 = pneg %p70
      %p77 = scmp.eq.s32.totalorder %s28, 3
      %p78 = por %p76, %p77
      %p79 = scmp.ne.s32.totalorder %s71, %s74
      %p80 = scmp.eq.s32.totalorder %s28, 0
      %p81 = por %p79, %p80
      %p82 = scmp.ne.s32.totalorder %s71, %s74
      %p83 = scmp.eq.s32.totalorder %s33, 3
      %p84 = por %p82, %p83
      %p85 = scmp.ne.s32.totalorder %s74, %s75
      %p86 = scmp.eq.s32.totalorder %s33, 0
      %p87 = por %p85, %p86
      %p88 = scmp.ne.s32.totalorder %s74, %s75
      %p89 = scmp.eq.s32.totalorder %s34, 3
      %p90 = por %p88, %p89
      %p92 = scmp.ne.s32.totalorder %s75, %s91
      %p93 = scmp.eq.s32.totalorder %s34, 0
      %p94 = por %p92, %p93
      %s95 = ssub.s32 %s35, %s47
      %p96 = scmp.eq.s32.totalorder %s95, 0
      %s98 = sadd.s32 %s97, 1
      %s99 = scalar_select %p96, %s97, %s98
      %p102 = pneg %p96
      %p103 = scmp.eq.s32.totalorder %s28, 3
      %p104 = por %p102, %p103
      %p105 = scmp.ne.s32.totalorder %s97, %s100
      %p106 = scmp.eq.s32.totalorder %s28, 0
      %p107 = por %p105, %p106
      %p108 = scmp.ne.s32.totalorder %s97, %s100
      %p109 = scmp.eq.s32.totalorder %s33, 3
      %p110 = por %p108, %p109
      %p111 = scmp.ne.s32.totalorder %s100, %s101
      %p112 = scmp.eq.s32.totalorder %s33, 0
      %p113 = por %p111, %p112
      %p114 = scmp.ne.s32.totalorder %s100, %s101
      %p115 = scmp.eq.s32.totalorder %s34, 3
      %p116 = por %p114, %p115
      %p118 = scmp.ne.s32.totalorder %s101, %s117
      %p119 = scmp.eq.s32.totalorder %s34, 0
      %p120 = por %p118, %p119
      %s121 = ssub.s32 %s35, %s47
      %p122 = scmp.eq.s32.totalorder %s121, 0
      %s124 = sadd.s32 %s123, 1
      %s125 = scalar_select %p122, %s123, %s124
      %p128 = pneg %p122
      %p129 = scmp.eq.s32.totalorder %s28, 3
      %p130 = por %p128, %p129
      %p131 = scmp.ne.s32.totalorder %s123, %s126
      %p132 = scmp.eq.s32.totalorder %s28, 0
      %p133 = por %p131, %p132
      %p134 = scmp.ne.s32.totalorder %s123, %s126
      %p135 = scmp.eq.s32.totalorder %s33, 3
      %p136 = por %p134, %p135
      %p137 = scmp.ne.s32.totalorder %s126, %s127
      %p138 = scmp.eq.s32.totalorder %s33, 0
      %p139 = por %p137, %p138
      %p140 = scmp.ne.s32.totalorder %s126, %s127
      %p141 = scmp.eq.s32.totalorder %s34, 3
      %p142 = por %p140, %p141
      %p144 = scmp.ne.s32.totalorder %s127, %s143
      %p145 = scmp.eq.s32.totalorder %s34, 0
      %p146 = por %p144, %p145
      %s147 = ssub.s32 %s35, %s47
      %p148 = scmp.eq.s32.totalorder %s147, 0
      %s150 = sadd.s32 %s149, 1
      %s151 = scalar_select %p148, %s149, %s150
      %p154 = pneg %p148
      %p155 = scmp.eq.s32.totalorder %s28, 3
      %p156 = por %p154, %p155
      %p157 = scmp.ne.s32.totalorder %s149, %s152
      %p158 = scmp.eq.s32.totalorder %s28, 0
      %p159 = por %p157, %p158
      %p160 = scmp.ne.s32.totalorder %s149, %s152
      %p161 = scmp.eq.s32.totalorder %s33, 3
      %p162 = por %p160, %p161
      %p163 = scmp.ne.s32.totalorder %s152, %s153
      %p164 = scmp.eq.s32.totalorder %s33, 0
      %p165 = por %p163, %p164
      %p166 = scmp.ne.s32.totalorder %s152, %s153
      %p167 = scmp.eq.s32.totalorder %s34, 3
      %p168 = por %p166, %p167
      %p170 = scmp.ne.s32.totalorder %s153, %s169
      %p171 = scmp.eq.s32.totalorder %s34, 0
      %p172 = por %p170, %p171
      %s173 = ssub.s32 %s35, %s47
      %p174 = scmp.eq.s32.totalorder %s173, 0
      %s176 = sadd.s32 %s175, 1
      %s177 = scalar_select %p174, %s175, %s176
      %p180 = pneg %p174
      %p181 = scmp.eq.s32.totalorder %s28, 3
      %p182 = por %p180, %p181
      %p183 = scmp.ne.s32.totalorder %s175, %s178
      %p184 = scmp.eq.s32.totalorder %s28, 0
      %p185 = por %p183, %p184
      %p186 = scmp.ne.s32.totalorder %s175, %s178
      %p187 = scmp.eq.s32.totalorder %s33, 3
      %p188 = por %p186, %p187
      %p189 = scmp.ne.s32.totalorder %s178, %s179
      %p190 = scmp.eq.s32.totalorder %s33, 0
      %p191 = por %p189, %p190
      %p192 = scmp.ne.s32.totalorder %s178, %s179
      %p193 = scmp.eq.s32.totalorder %s34, 3
      %p194 = por %p192, %p193
      %p196 = scmp.ne.s32.totalorder %s179, %s195
      %p197 = scmp.eq.s32.totalorder %s34, 0
      %p198 = por %p196, %p197
      %s199 = ssub.s32 %s35, %s47
      %p200 = scmp.eq.s32.totalorder %s199, 0
      %s202 = sadd.s32 %s201, 1
      %s203 = scalar_select %p200, %s201, %s202
      %p206 = pneg %p200
      %p207 = scmp.eq.s32.totalorder %s28, 3
      %p208 = por %p206, %p207
      %p209 = scmp.ne.s32.totalorder %s201, %s204
      %p210 = scmp.eq.s32.totalorder %s28, 0
      %p211 = por %p209, %p210
      %p212 = scmp.ne.s32.totalorder %s201, %s204
      %p213 = scmp.eq.s32.totalorder %s33, 3
      %p214 = por %p212, %p213
      %p215 = scmp.ne.s32.totalorder %s204, %s205
      %p216 = scmp.eq.s32.totalorder %s33, 0
      %p217 = por %p215, %p216
      %p218 = scmp.ne.s32.totalorder %s204, %s205
      %p219 = scmp.eq.s32.totalorder %s34, 3
      %p220 = por %p218, %p219
      %p222 = scmp.ne.s32.totalorder %s205, %s221
      %p223 = scmp.eq.s32.totalorder %s34, 0
      %p224 = por %p222, %p223
      %s225 = ssub.s32 %s35, %s47
      %p226 = scmp.eq.s32.totalorder %s225, 0
      %s228 = sadd.s32 %s227, 1
      %s229 = scalar_select %p226, %s227, %s228
      %p232 = pneg %p226
      %p233 = scmp.eq.s32.totalorder %s28, 3
      %p234 = por %p232, %p233
      %p235 = scmp.ne.s32.totalorder %s227, %s230
      %p236 = scmp.eq.s32.totalorder %s28, 0
      %p237 = por %p235, %p236
      %p238 = scmp.ne.s32.totalorder %s227, %s230
      %p239 = scmp.eq.s32.totalorder %s33, 3
      %p240 = por %p238, %p239
      %p241 = scmp.ne.s32.totalorder %s230, %s231
      %p242 = scmp.eq.s32.totalorder %s33, 0
      %p243 = por %p241, %p242
      %p244 = scmp.ne.s32.totalorder %s230, %s231
      %p245 = scmp.eq.s32.totalorder %s34, 3
      %p246 = por %p244, %p245
      %p248 = scmp.ne.s32.totalorder %s231, %s247
      %p249 = scmp.eq.s32.totalorder %s34, 0
      %p250 = por %p248, %p249
      %s252 = sadd.s32 %s251, 1
      %p255 = scmp.eq.s32.totalorder %s28, 3
      %p256 = scmp.ne.s32.totalorder %s251, %s253
      %p257 = scmp.eq.s32.totalorder %s28, 0
      %p258 = por %p256, %p257
      %p259 = scmp.ne.s32.totalorder %s251, %s253
      %p260 = scmp.eq.s32.totalorder %s33, 3
      %p261 = por %p259, %p260
      %p262 = scmp.ne.s32.totalorder %s253, %s254
      %p263 = scmp.eq.s32.totalorder %s33, 0
      %p264 = por %p262, %p263
      %p265 = scmp.ne.s32.totalorder %s253, %s254
      %p266 = scmp.eq.s32.totalorder %s34, 3
      %p267 = por %p265, %p266
      %p269 = scmp.ne.s32.totalorder %s254, %s268
      %p270 = scmp.eq.s32.totalorder %s34, 0
      %p271 = por %p269, %p270
      %p272 = scmp.le.s32.totalorder 1, %s28
      %p273 = scmp.lt.s32.totalorder %s28, 5
      %p274 = pnand %p272, %p273
      %p275 = pneg %p274
      // Predicated region
      $region9: #{tpu_custom_call.1} parent=5 // pred_check
        _
      $region10: #{tpu_custom_call.1} parent=5 // pred_check_branch
        %277 = sbr.rel (%p274) target = $region12
      $region11: #{tpu_custom_call.1} parent=5 // pred_region
        %s278 = ssub.s32 %s28, 1
        // Predicated region
        $region13: #{tpu_custom_call.1} parent=11 // pred_check
          %p279 = pneg %p61
        $region14: #{tpu_custom_call.1} parent=11 // pred_check_branch
          %281 = sbr.rel (%p279) target = $region16
        $region15: #{tpu_custom_call.1} parent=11 // pred_region
          %s283 = ssub.s32 256, 256
          %284 = vsyncadd [#allocation7], %s283
          %s285 = sshll.u32 [#allocation6], 4
          %s286 = int_to_ptr.vmem [resolvable:$true] %s285
          %291 = dma.hbm_to_vmem [thread:$0]  %s0, 256, %s286, [#allocation7], 128, 128, 8
        $region16: #{tpu_custom_call.1} parent=11 // pred_fallthru
          _
      $region12: #{tpu_custom_call.1} parent=5 // pred_fallthru
        _
      %p292 = scmp.lt.s32.totalorder %s28, 4
      // Predicated region
      $region17: #{tpu_custom_call.1} parent=5 // pred_check
        %p293 = pneg %p292
      $region18: #{tpu_custom_call.1} parent=5 // pred_check_branch
        %295 = sbr.rel (%p293) target = $region20
      $region19: #{tpu_custom_call.1} parent=5 // pred_region
        // Predicated region
        $region21: #{tpu_custom_call.1} parent=19 // pred_check
          %p296 = pneg %p81
        $region22: #{tpu_custom_call.1} parent=19 // pred_check_branch
          %298 = sbr.rel (%p296) target = $region24
        $region23: #{tpu_custom_call.1} parent=19 // pred_region
          %s299 = sand.u32 %s28, 1
          %s300 = scalar_lea.sflag [#allocation10], %s299
          %s301 = sand.u32 %s71, 1
          %s302 = smul.addr %s301, 8
          %s303 = scalar_lea.vmem [#allocation9], %s302
          %s305 = ssub.s32 128, 128
          %306 = vsyncadd %s300, %s305
          %s307 = smul.addr %s36, 128
          %s308 = scalar_lea.hbm %s1, %s307
          %s310 = sshll.u32 %s303, 4
          %s311 = int_to_ptr.vmem [resolvable:$true] %s310
          %313 = dma.hbm_to_vmem [thread:$0]  %s308, 128, %s311, %s300
        $region24: #{tpu_custom_call.1} parent=19 // pred_fallthru
          _
        // Predicated region
        $region25: #{tpu_custom_call.1} parent=19 // pred_check
          %p314 = pneg %p107
        $region26: #{tpu_custom_call.1} parent=19 // pred_check_branch
          %316 = sbr.rel (%p314) target = $region28
        $region27: #{tpu_custom_call.1} parent=19 // pred_region
          %s317 = sand.u32 %s28, 1
          %s318 = scalar_lea.sflag [#allocation10], %s317
          %s319 = sand.u32 %s97, 1
          %s320 = smul.addr %s319, 16
          %s321 = scalar_lea.vmem [#allocation11], %s320
          %s323 = ssub.s32 256, 256
          %324 = vsyncadd %s318, %s323
          %s325 = smul.addr %s35, 4
          %s326 = smul.addr %s325, 64
          %s327 = scalar_lea.hbm %s2, %s326
          %s328 = sshll.u32 %s321, 4
          %s329 = int_to_ptr.vmem [resolvable:$true] %s328
          %334 = dma.hbm_to_vmem [thread:$0]  %s327, 256, %s329, %s318, 64, 64, 4
        $region28: #{tpu_custom_call.1} parent=19 // pred_fallthru
          _
        // Predicated region
        $region29: #{tpu_custom_call.1} parent=19 // pred_check
          %p335 = pneg %p133
        $region30: #{tpu_custom_call.1} parent=19 // pred_check_branch
          %337 = sbr.rel (%p335) target = $region32
        $region31: #{tpu_custom_call.1} parent=19 // pred_region
          %s338 = sand.u32 %s28, 1
          %s339 = scalar_lea.sflag [#allocation13], %s338
          %s340 = sand.u32 %s123, 1
          %s341 = smul.addr %s340, 16
          %s342 = scalar_lea.vmem [#allocation12], %s341
          %s344 = ssub.s32 256, 256
          %345 = vsyncadd %s339, %s344
          %s346 = smul.addr %s35, 4
          %s347 = smul.addr %s346, 64
          %s348 = scalar_lea.hbm %s3, %s347
          %s349 = sshll.u32 %s342, 4
          %s350 = int_to_ptr.vmem [resolvable:$true] %s349
          %355 = dma.hbm_to_vmem [thread:$0]  %s348, 256, %s350, %s339, 64, 64, 4
        $region32: #{tpu_custom_call.1} parent=19 // pred_fallthru
          _
        // Predicated region
        $region33: #{tpu_custom_call.1} parent=19 // pred_check
          %p356 = pneg %p159
        $region34: #{tpu_custom_call.1} parent=19 // pred_check_branch
          %358 = sbr.rel (%p356) target = $region36
        $region35: #{tpu_custom_call.1} parent=19 // pred_region
          %s359 = sand.u32 %s28, 1
          %s360 = scalar_lea.sflag [#allocation13], %s359
          %s361 = sand.u32 %s149, 1
          %s362 = scalar_lea.vmem [#allocation14], %s361
          %s364 = ssub.s32 16, 16
          %365 = vsyncadd %s360, %s364
          %s366 = smul.addr %s35, 16
          %s367 = scalar_lea.hbm %s4, %s366
          %s369 = sshll.u32 %s362, 4
          %s370 = int_to_ptr.vmem [resolvable:$true] %s369
          %372 = dma.hbm_to_vmem [thread:$0]  %s367, 16, %s370, %s360
        $region36: #{tpu_custom_call.1} parent=19 // pred_fallthru
          _
        // Predicated region
        $region37: #{tpu_custom_call.1} parent=19 // pred_check
          %p373 = pneg %p185
        $region38: #{tpu_custom_call.1} parent=19 // pred_check_branch
          %375 = sbr.rel (%p373) target = $region40
        $region39: #{tpu_custom_call.1} parent=19 // pred_region
          %s376 = sand.u32 %s28, 1
          %s377 = scalar_lea.sflag [#allocation16], %s376
          %s378 = sand.u32 %s175, 1
          %s379 = scalar_lea.vmem [#allocation15], %s378
          %s381 = ssub.s32 16, 16
          %382 = vsyncadd %s377, %s381
          %s383 = smul.addr %s35, 16
          %s384 = scalar_lea.hbm %s5, %s383
          %s386 = sshll.u32 %s379, 4
          %s387 = int_to_ptr.vmem [resolvable:$true] %s386
          %389 = dma.hbm_to_vmem [thread:$0]  %s384, 16, %s387, %s377
        $region40: #{tpu_custom_call.1} parent=19 // pred_fallthru
          _
        // Predicated region
        $region41: #{tpu_custom_call.1} parent=19 // pred_check
          %p390 = pneg %p211
        $region42: #{tpu_custom_call.1} parent=19 // pred_check_branch
          %392 = sbr.rel (%p390) target = $region44
        $region43: #{tpu_custom_call.1} parent=19 // pred_region
          %s393 = sand.u32 %s28, 1
          %s394 = scalar_lea.sflag [#allocation16], %s393
          %s395 = sand.u32 %s201, 1
          %s396 = smul.addr %s395, 16
          %s397 = scalar_lea.vmem [#allocation17], %s396
          %s399 = ssub.s32 256, 256
          %400 = vsyncadd %s394, %s399
          %s401 = smul.addr %s35, 4
          %s402 = smul.addr %s401, 64
          %s403 = scalar_lea.hbm %s6, %s402
          %s404 = sshll.u32 %s397, 4
          %s405 = int_to_ptr.vmem [resolvable:$true] %s404
          %410 = dma.hbm_to_vmem [thread:$0]  %s403, 256, %s405, %s394, 64, 64, 4
        $region44: #{tpu_custom_call.1} parent=19 // pred_fallthru
          _
        // Predicated region
        $region45: #{tpu_custom_call.1} parent=19 // pred_check
          %p411 = pneg %p237
        $region46: #{tpu_custom_call.1} parent=19 // pred_check_branch
          %413 = sbr.rel (%p411) target = $region48
        $region47: #{tpu_custom_call.1} parent=19 // pred_region
          %s414 = sand.u32 %s227, 1
          %s415 = scalar_lea.sflag [#allocation19], %s414
          %s416 = sand.u32 %s227, 1
          %s417 = scalar_lea.vmem [#allocation18], %s416
          %s419 = ssub.s32 16, 16
          %420 = vsyncadd %s415, %s419
          %s421 = smul.addr %s35, 16
          %s422 = scalar_lea.hbm %s7, %s421
          %s424 = sshll.u32 %s417, 4
          %s425 = int_to_ptr.vmem [resolvable:$true] %s424
          %427 = dma.hbm_to_vmem [thread:$0]  %s422, 16, %s425, %s415
        $region48: #{tpu_custom_call.1} parent=19 // pred_fallthru
          _
      $region20: #{tpu_custom_call.1} parent=5 // pred_fallthru
        _
      %p428 = scmp.le.s32.totalorder 1, %s28
      %p429 = scmp.lt.s32.totalorder %s28, 5
      %p430 = pnand %p428, %p429
      %p431 = pneg %p430
      // Predicated region
      $region49: #{tpu_custom_call.1} parent=5 // pred_check
        _
      $region50: #{tpu_custom_call.1} parent=5 // pred_check_branch
        %433 = sbr.rel (%p430) target = $region52
      $region51: #{tpu_custom_call.1} parent=5 // pred_region
        %s434 = ssub.s32 %s28, 1
        // Predicated region
        $region53: #{tpu_custom_call.1} parent=51 // pred_check
          %p435 = pneg %p61
        $region54: #{tpu_custom_call.1} parent=51 // pred_check_branch
          %437 = sbr.rel (%p435) target = $region56
        $region55: #{tpu_custom_call.1} parent=51 // pred_region
          %438 = dma.done [#allocation7], 256
        $region56: #{tpu_custom_call.1} parent=51 // pred_fallthru
          _
        %s439 = sand.u32 %s33, 1
        %s440 = scalar_lea.sflag [#allocation10], %s439
        %s441 = sand.u32 %s74, 1
        %s442 = smul.addr %s441, 8
        %s443 = scalar_lea.vmem [#allocation9], %s442
        // Predicated region
        $region57: #{tpu_custom_call.1} parent=51 // pred_check
          %p444 = pneg %p87
        $region58: #{tpu_custom_call.1} parent=51 // pred_check_branch
          %446 = sbr.rel (%p444) target = $region60
        $region59: #{tpu_custom_call.1} parent=51 // pred_region
          %447 = dma.done %s440, 128
        $region60: #{tpu_custom_call.1} parent=51 // pred_fallthru
          _
        %s448 = sand.u32 %s33, 1
        %s449 = scalar_lea.sflag [#allocation10], %s448
        %s450 = sand.u32 %s100, 1
        %s451 = smul.addr %s450, 16
        %s452 = scalar_lea.vmem [#allocation11], %s451
        // Predicated region
        $region61: #{tpu_custom_call.1} parent=51 // pred_check
          %p453 = pneg %p113
        $region62: #{tpu_custom_call.1} parent=51 // pred_check_branch
          %455 = sbr.rel (%p453) target = $region64
        $region63: #{tpu_custom_call.1} parent=51 // pred_region
          %456 = dma.done %s449, 256
        $region64: #{tpu_custom_call.1} parent=51 // pred_fallthru
          _
        %s457 = sand.u32 %s33, 1
        %s458 = scalar_lea.sflag [#allocation13], %s457
        %s459 = sand.u32 %s126, 1
        %s460 = smul.addr %s459, 16
        %s461 = scalar_lea.vmem [#allocation12], %s460
        // Predicated region
        $region65: #{tpu_custom_call.1} parent=51 // pred_check
          %p462 = pneg %p139
        $region66: #{tpu_custom_call.1} parent=51 // pred_check_branch
          %464 = sbr.rel (%p462) target = $region68
        $region67: #{tpu_custom_call.1} parent=51 // pred_region
          %465 = dma.done %s458, 256
        $region68: #{tpu_custom_call.1} parent=51 // pred_fallthru
          _
        %s466 = sand.u32 %s33, 1
        %s467 = scalar_lea.sflag [#allocation13], %s466
        %s468 = sand.u32 %s152, 1
        %s469 = scalar_lea.vmem [#allocation14], %s468
        // Predicated region
        $region69: #{tpu_custom_call.1} parent=51 // pred_check
          %p470 = pneg %p165
        $region70: #{tpu_custom_call.1} parent=51 // pred_check_branch
          %472 = sbr.rel (%p470) target = $region72
        $region71: #{tpu_custom_call.1} parent=51 // pred_region
          %473 = dma.done %s467, 16
        $region72: #{tpu_custom_call.1} parent=51 // pred_fallthru
          _
        %s474 = sand.u32 %s33, 1
        %s475 = scalar_lea.sflag [#allocation16], %s474
        %s476 = sand.u32 %s178, 1
        %s477 = scalar_lea.vmem [#allocation15], %s476
        // Predicated region
        $region73: #{tpu_custom_call.1} parent=51 // pred_check
          %p478 = pneg %p191
        $region74: #{tpu_custom_call.1} parent=51 // pred_check_branch
          %480 = sbr.rel (%p478) target = $region76
        $region75: #{tpu_custom_call.1} parent=51 // pred_region
          %481 = dma.done %s475, 16
        $region76: #{tpu_custom_call.1} parent=51 // pred_fallthru
          _
        %s482 = sand.u32 %s33, 1
        %s483 = scalar_lea.sflag [#allocation16], %s482
        %s484 = sand.u32 %s204, 1
        %s485 = smul.addr %s484, 16
        %s486 = scalar_lea.vmem [#allocation17], %s485
        // Predicated region
        $region77: #{tpu_custom_call.1} parent=51 // pred_check
          %p487 = pneg %p217
        $region78: #{tpu_custom_call.1} parent=51 // pred_check_branch
          %489 = sbr.rel (%p487) target = $region80
        $region79: #{tpu_custom_call.1} parent=51 // pred_region
          %490 = dma.done %s483, 256
        $region80: #{tpu_custom_call.1} parent=51 // pred_fallthru
          _
        %s491 = sand.u32 %s230, 1
        %s492 = scalar_lea.sflag [#allocation19], %s491
        %s493 = sand.u32 %s230, 1
        %s494 = scalar_lea.vmem [#allocation18], %s493
        // Predicated region
        $region81: #{tpu_custom_call.1} parent=51 // pred_check
          %p495 = pneg %p243
        $region82: #{tpu_custom_call.1} parent=51 // pred_check_branch
          %497 = sbr.rel (%p495) target = $region84
        $region83: #{tpu_custom_call.1} parent=51 // pred_region
          %498 = dma.done %s492, 16
        $region84: #{tpu_custom_call.1} parent=51 // pred_fallthru
          _
        %p499 = pneg %p61
        %p500 = pneg %p58
        %s501 = sand.u32 %s33, 1
        %s502 = scalar_lea.sflag [#allocation10], %s501
        %s503 = sand.u32 %s74, 1
        %s504 = smul.addr %s503, 8
        %s505 = scalar_lea.vmem [#allocation9], %s504
        %p506 = pneg %p87
        %p507 = pneg %p84
        %s508 = sand.u32 %s33, 1
        %s509 = scalar_lea.sflag [#allocation10], %s508
        %s510 = sand.u32 %s100, 1
        %s511 = smul.addr %s510, 16
        %s512 = scalar_lea.vmem [#allocation11], %s511
        %p513 = pneg %p113
        %p514 = pneg %p110
        %s515 = sand.u32 %s33, 1
        %s516 = scalar_lea.sflag [#allocation13], %s515
        %s517 = sand.u32 %s126, 1
        %s518 = smul.addr %s517, 16
        %s519 = scalar_lea.vmem [#allocation12], %s518
        %p520 = pneg %p139
        %p521 = pneg %p136
        %s522 = sand.u32 %s33, 1
        %s523 = scalar_lea.sflag [#allocation13], %s522
        %s524 = sand.u32 %s152, 1
        %s525 = scalar_lea.vmem [#allocation14], %s524
        %p526 = pneg %p165
        %p527 = pneg %p162
        %s528 = sand.u32 %s33, 1
        %s529 = scalar_lea.sflag [#allocation16], %s528
        %s530 = sand.u32 %s178, 1
        %s531 = scalar_lea.vmem [#allocation15], %s530
        %p532 = pneg %p191
        %p533 = pneg %p188
        %s534 = sand.u32 %s33, 1
        %s535 = scalar_lea.sflag [#allocation16], %s534
        %s536 = sand.u32 %s204, 1
        %s537 = smul.addr %s536, 16
        %s538 = scalar_lea.vmem [#allocation17], %s537
        %p539 = pneg %p217
        %p540 = pneg %p214
        %s541 = sand.u32 %s230, 1
        %s542 = scalar_lea.sflag [#allocation19], %s541
        %s543 = sand.u32 %s230, 1
        %s544 = scalar_lea.vmem [#allocation18], %s543
        %p545 = pneg %p243
        %p546 = pneg %p240
        %p547 = pneg %p264
        %p548 = pneg %p261
        %p550 = scmp.eq.s32.totalorder %s38, 0
        // Predicated region
        $region85: #{tpu_custom_call.1} parent=51 // pred_check
          %p551 = pneg %p550
        $region86: #{tpu_custom_call.1} parent=51 // pred_check_branch
          %553 = sbr.rel (%p551) target = $region88
        $region87: #{tpu_custom_call.1} parent=51 // pred_region
          %p554 = scmp.eq.s32.totalorder %s37, 0
          // Predicated region
          $region89: #{tpu_custom_call.1} parent=87 // pred_check
            %p555 = pneg %p554
          $region90: #{tpu_custom_call.1} parent=87 // pred_check_branch
            %557 = sbr.rel (%p555) target = $region92
          $region91: #{tpu_custom_call.1} parent=87 // pred_region
            %v558 = vld [vmem:[#allocation6] sm:$0xff]
            %v559 = vld [vmem:[#allocation6 + $0x8] sm:$0xff]
            %v560 = vpack.c.bf16 %v559, %v558
            %v561 = vld [vmem:[%s452] sm:$0xf]
            %v562 = vld [vmem:[%s452 + $0x4] sm:$0xf]
            %v563 = vld [vmem:[%s452 + $0x8] sm:$0xf]
            %v564 = vld [vmem:[%s452 + $0xc] sm:$0xf]
            %v565 = vld [vmem:[%s469] sm:$0x1]
            %v567 = vlaneseq
            %v568 = vshrl.u32 %v567, 7
            %v569 = vsub.s32 0, %v568
            %v570 = vrot.slane %v565, %v569
            %v576 = vunpack.c.l.b16 %v561
            %v577 = vunpack.c.l.b16 %v562
            %v578 = vunpack.c.l.b16 %v563
            %v579 = vunpack.c.l.b16 %v564
            %v580 = vpack.c.b16 %v577, %v576
            %v581 = vpack.c.b16 %v579, %v578
            %vm584 = vcmask 261120
            %v586 = vsel %vm584, %v560, 0
            %588 = vmatprep.subr.bf16.mxu0 0
            %589 = vmatpush1.bf16.msra.mxu0 %v580
            %590 = vmatprep.subr.bf16.mxu0 0
            %591 = vmatpush1.bf16.msra.mxu0 %v581
            %592 = vmatprep.subr.bf16.mxu0 0
            %593 = vmatpush1.bf16.msra.mxu0 0
            %594 = vmatprep.subr.bf16.mxu0 0
            %595 = vmatpush1.bf16.msra.mxu0 0
            %596 = vmatprep.subr.bf16.mxu0 0
            %597 = vmatpush1.bf16.msra.mxu0 0
            %598 = vmatprep.subr.bf16.mxu0 0
            %599 = vmatpush1.bf16.msra.mxu0 0
            %600 = vmatprep.subr.bf16.mxu0 0
            %601 = vmatpush1.bf16.msra.mxu0 0
            %602 = vmatprep.subr.bf16.mxu0 0
            %603 = vmatpush1.bf16.msra.mxu0 0
            %604 = vmatprep.subr.bf16.mxu0 0
            %605 = vmatpush1.bf16.msra.mxu0 0
            %606 = vmatprep.subr.bf16.mxu0 0
            %607 = vmatpush1.bf16.msra.mxu0 0
            %608 = vmatprep.subr.bf16.mxu0 0
            %609 = vmatpush1.bf16.msra.mxu0 0
            %610 = vmatprep.subr.bf16.mxu0 0
            %611 = vmatpush1.bf16.msra.mxu0 0
            %612 = vmatprep.subr.bf16.mxu0 0
            %613 = vmatpush1.bf16.msra.mxu0 0
            %614 = vmatprep.subr.bf16.mxu0 0
            %615 = vmatpush1.bf16.msra.mxu0 0
            %616 = vmatprep.subr.bf16.mxu0 0
            %617 = vmatpush1.bf16.msra.mxu0 0
            %618 = vmatprep.subr.bf16.mxu0 0
            %619 = vmatpush1.bf16.msra.mxu0 0
            %620 = vmatprep.mubr.bf16.mxu0 0
            %621 = vmatmul.mubr.bf16.gmra.mrb[0].mxu0 %v586
            %v622 = vpop.f32.mrb[0].mxu0
            %v623 = vadd.f32 %v570, %v622
            %v624 = vpop.f32.mrb[0].mxu0
            %v625 = vpop.f32.mrb[0].mxu0
            %v626 = vadd.f32 %v570, %v625
            %v627 = vpop.f32.mrb[0].mxu0
            %628 = vdwg.mxu0
            %v629 = vld [vmem:[%s461] sm:$0xf]
            %v630 = vld [vmem:[%s461 + $0x4] sm:$0xf]
            %v631 = vld [vmem:[%s461 + $0x8] sm:$0xf]
            %v632 = vld [vmem:[%s461 + $0xc] sm:$0xf]
            %v633 = vld [vmem:[%s477] sm:$0x1]
            %v635 = vlaneseq
            %v636 = vshrl.u32 %v635, 7
            %v637 = vsub.s32 0, %v636
            %v638 = vrot.slane %v633, %v637
            %v644 = vunpack.c.l.b16 %v629
            %v645 = vunpack.c.l.b16 %v630
            %v646 = vunpack.c.l.b16 %v631
            %v647 = vunpack.c.l.b16 %v632
            %v648 = vpack.c.b16 %v645, %v644
            %v649 = vpack.c.b16 %v647, %v646
            %652 = vmatprep.subr.bf16.mxu0 0
            %653 = vmatpush1.bf16.msra.mxu0 %v648
            %654 = vmatprep.subr.bf16.mxu0 0
            %655 = vmatpush1.bf16.msra.mxu0 %v649
            %656 = vmatprep.subr.bf16.mxu0 0
            %657 = vmatpush1.bf16.msra.mxu0 0
            %658 = vmatprep.subr.bf16.mxu0 0
            %659 = vmatpush1.bf16.msra.mxu0 0
            %660 = vmatprep.subr.bf16.mxu0 0
            %661 = vmatpush1.bf16.msra.mxu0 0
            %662 = vmatprep.subr.bf16.mxu0 0
            %663 = vmatpush1.bf16.msra.mxu0 0
            %664 = vmatprep.subr.bf16.mxu0 0
            %665 = vmatpush1.bf16.msra.mxu0 0
            %666 = vmatprep.subr.bf16.mxu0 0
            %667 = vmatpush1.bf16.msra.mxu0 0
            %668 = vmatprep.subr.bf16.mxu0 0
            %669 = vmatpush1.bf16.msra.mxu0 0
            %670 = vmatprep.subr.bf16.mxu0 0
            %671 = vmatpush1.bf16.msra.mxu0 0
            %672 = vmatprep.subr.bf16.mxu0 0
            %673 = vmatpush1.bf16.msra.mxu0 0
            %674 = vmatprep.subr.bf16.mxu0 0
            %675 = vmatpush1.bf16.msra.mxu0 0
            %676 = vmatprep.subr.bf16.mxu0 0
            %677 = vmatpush1.bf16.msra.mxu0 0
            %678 = vmatprep.subr.bf16.mxu0 0
            %679 = vmatpush1.bf16.msra.mxu0 0
            %680 = vmatprep.subr.bf16.mxu0 0
            %681 = vmatpush1.bf16.msra.mxu0 0
            %682 = vmatprep.subr.bf16.mxu0 0
            %683 = vmatpush1.bf16.msra.mxu0 0
            %684 = vmatprep.mubr.bf16.mxu0 0
            %685 = vmatmul.mubr.bf16.gmra.mrb[0].mxu0 %v586
            %v686 = vpop.f32.mrb[0].mxu0
            %v687 = vadd.f32 %v638, %v686
            %v688 = vpop.f32.mrb[0].mxu0
            %v689 = vpop.f32.mrb[0].mxu0
            %v690 = vadd.f32 %v638, %v689
            %v691 = vpop.f32.mrb[0].mxu0
            %692 = vdwg.mxu0
            %693 = vst.msk [vmem:[#allocation3] sm:$0xff] %vm584, %v623
            %694 = vst.msk [vmem:[#allocation3 + $0x8] sm:$0xff] %vm584, %v626
            %695 = vst.msk [vmem:[#allocation4] sm:$0xff] %vm584, %v687
            %696 = vst.msk [vmem:[#allocation4 + $0x8] sm:$0xff] %vm584, %v690
            %v697 = vpack.c.bf16 %v626, %v623
            %vm698 = vcmask 64512
            %699 = vst.msk [vmem:[#allocation5] sm:$0xff] %vm698, %v697
            %701 = vrot.lane.b32.xlu0 %v697, 120
            %v702 = vpop.permute.xlu0 %701
            %s704 = scalar_lea.vmem [#allocation5], 8
            %705 = vst.msk [vmem:[%s704] sm:$0xff] %vm698, %v702
            %706 = vrot.lane.b32.xlu0 %v697, 112
            %v707 = vpop.permute.xlu0 %706
            %s709 = scalar_lea.vmem [#allocation5], 16
            %710 = vst.msk [vmem:[%s709] sm:$0xff] %vm698, %v707
            %711 = vrot.lane.b32.xlu0 %v697, 104
            %v712 = vpop.permute.xlu0 %711
            %s714 = scalar_lea.vmem [#allocation5], 24
            %715 = vst.msk [vmem:[%s714] sm:$0xff] %vm698, %v712
          $region92: #{tpu_custom_call.1} parent=87 // pred_fallthru
            _
          %p716 = scmp.gt.s32.totalorder %s37, 0
          // Predicated region
          $region93: #{tpu_custom_call.1} parent=87 // pred_check
            %p717 = pneg %p716
          $region94: #{tpu_custom_call.1} parent=87 // pred_check_branch
            %719 = sbr.rel (%p717) target = $region96
          $region95: #{tpu_custom_call.1} parent=87 // pred_region
            %v720 = vld [vmem:[#allocation2] sm:$0xff]
            %v721 = vld [vmem:[#allocation2 + $0x8] sm:$0xff]
            %v722 = vpack.c.bf16 %v721, %v720
            %v723 = vld [vmem:[%s452] sm:$0xf]
            %v724 = vld [vmem:[%s452 + $0x4] sm:$0xf]
            %v725 = vld [vmem:[%s452 + $0x8] sm:$0xf]
            %v726 = vld [vmem:[%s452 + $0xc] sm:$0xf]
            %v727 = vld [vmem:[%s469] sm:$0x1]
            %v729 = vlaneseq
            %v730 = vshrl.u32 %v729, 7
            %v731 = vsub.s32 0, %v730
            %v732 = vrot.slane %v727, %v731
            %v738 = vunpack.c.l.b16 %v723
            %v739 = vunpack.c.l.b16 %v724
            %v740 = vunpack.c.l.b16 %v725
            %v741 = vunpack.c.l.b16 %v726
            %v742 = vpack.c.b16 %v739, %v738
            %v743 = vpack.c.b16 %v741, %v740
            %vm746 = vcmask 261120
            %v748 = vsel %vm746, %v722, 0
            %750 = vmatprep.subr.bf16.mxu0 0
            %751 = vmatpush1.bf16.msra.mxu0 %v742
            %752 = vmatprep.subr.bf16.mxu0 0
            %753 = vmatpush1.bf16.msra.mxu0 %v743
            %754 = vmatprep.subr.bf16.mxu0 0
            %755 = vmatpush1.bf16.msra.mxu0 0
            %756 = vmatprep.subr.bf16.mxu0 0
            %757 = vmatpush1.bf16.msra.mxu0 0
            %758 = vmatprep.subr.bf16.mxu0 0
            %759 = vmatpush1.bf16.msra.mxu0 0
            %760 = vmatprep.subr.bf16.mxu0 0
            %761 = vmatpush1.bf16.msra.mxu0 0
            %762 = vmatprep.subr.bf16.mxu0 0
            %763 = vmatpush1.bf16.msra.mxu0 0
            %764 = vmatprep.subr.bf16.mxu0 0
            %765 = vmatpush1.bf16.msra.mxu0 0
            %766 = vmatprep.subr.bf16.mxu0 0
            %767 = vmatpush1.bf16.msra.mxu0 0
            %768 = vmatprep.subr.bf16.mxu0 0
            %769 = vmatpush1.bf16.msra.mxu0 0
            %770 = vmatprep.subr.bf16.mxu0 0
            %771 = vmatpush1.bf16.msra.mxu0 0
            %772 = vmatprep.subr.bf16.mxu0 0
            %773 = vmatpush1.bf16.msra.mxu0 0
            %774 = vmatprep.subr.bf16.mxu0 0
            %775 = vmatpush1.bf16.msra.mxu0 0
            %776 = vmatprep.subr.bf16.mxu0 0
            %777 = vmatpush1.bf16.msra.mxu0 0
            %778 = vmatprep.subr.bf16.mxu0 0
            %779 = vmatpush1.bf16.msra.mxu0 0
            %780 = vmatprep.subr.bf16.mxu0 0
            %781 = vmatpush1.bf16.msra.mxu0 0
            %782 = vmatprep.mubr.bf16.mxu0 0
            %783 = vmatmul.mubr.bf16.gmra.mrb[0].mxu0 %v748
            %v784 = vpop.f32.mrb[0].mxu0
            %v785 = vadd.f32 %v732, %v784
            %v786 = vpop.f32.mrb[0].mxu0
            %v787 = vpop.f32.mrb[0].mxu0
            %v788 = vadd.f32 %v732, %v787
            %v789 = vpop.f32.mrb[0].mxu0
            %790 = vdwg.mxu0
            %v791 = vld [vmem:[%s461] sm:$0xf]
            %v792 = vld [vmem:[%s461 + $0x4] sm:$0xf]
            %v793 = vld [vmem:[%s461 + $0x8] sm:$0xf]
            %v794 = vld [vmem:[%s461 + $0xc] sm:$0xf]
            %v795 = vld [vmem:[%s477] sm:$0x1]
            %v797 = vlaneseq
            %v798 = vshrl.u32 %v797, 7
            %v799 = vsub.s32 0, %v798
            %v800 = vrot.slane %v795, %v799
            %v806 = vunpack.c.l.b16 %v791
            %v807 = vunpack.c.l.b16 %v792
            %v808 = vunpack.c.l.b16 %v793
            %v809 = vunpack.c.l.b16 %v794
            %v810 = vpack.c.b16 %v807, %v806
            %v811 = vpack.c.b16 %v809, %v808
            %814 = vmatprep.subr.bf16.mxu0 0
            %815 = vmatpush1.bf16.msra.mxu0 %v810
            %816 = vmatprep.subr.bf16.mxu0 0
            %817 = vmatpush1.bf16.msra.mxu0 %v811
            %818 = vmatprep.subr.bf16.mxu0 0
            %819 = vmatpush1.bf16.msra.mxu0 0
            %820 = vmatprep.subr.bf16.mxu0 0
            %821 = vmatpush1.bf16.msra.mxu0 0
            %822 = vmatprep.subr.bf16.mxu0 0
            %823 = vmatpush1.bf16.msra.mxu0 0
            %824 = vmatprep.subr.bf16.mxu0 0
            %825 = vmatpush1.bf16.msra.mxu0 0
            %826 = vmatprep.subr.bf16.mxu0 0
            %827 = vmatpush1.bf16.msra.mxu0 0
            %828 = vmatprep.subr.bf16.mxu0 0
            %829 = vmatpush1.bf16.msra.mxu0 0
            %830 = vmatprep.subr.bf16.mxu0 0
            %831 = vmatpush1.bf16.msra.mxu0 0
            %832 = vmatprep.subr.bf16.mxu0 0
            %833 = vmatpush1.bf16.msra.mxu0 0
            %834 = vmatprep.subr.bf16.mxu0 0
            %835 = vmatpush1.bf16.msra.mxu0 0
            %836 = vmatprep.subr.bf16.mxu0 0
            %837 = vmatpush1.bf16.msra.mxu0 0
            %838 = vmatprep.subr.bf16.mxu0 0
            %839 = vmatpush1.bf16.msra.mxu0 0
            %840 = vmatprep.subr.bf16.mxu0 0
            %841 = vmatpush1.bf16.msra.mxu0 0
            %842 = vmatprep.subr.bf16.mxu0 0
            %843 = vmatpush1.bf16.msra.mxu0 0
            %844 = vmatprep.subr.bf16.mxu0 0
            %845 = vmatpush1.bf16.msra.mxu0 0
            %846 = vmatprep.mubr.bf16.mxu0 0
            %847 = vmatmul.mubr.bf16.gmra.mrb[0].mxu0 %v748
            %v848 = vpop.f32.mrb[0].mxu0
            %v849 = vadd.f32 %v800, %v848
            %v850 = vpop.f32.mrb[0].mxu0
            %v851 = vpop.f32.mrb[0].mxu0
            %v852 = vadd.f32 %v800, %v851
            %v853 = vpop.f32.mrb[0].mxu0
            %854 = vdwg.mxu0
            %855 = vst.msk [vmem:[#allocation3] sm:$0xff] %vm746, %v785
            %856 = vst.msk [vmem:[#allocation3 + $0x8] sm:$0xff] %vm746, %v788
            %857 = vst.msk [vmem:[#allocation4] sm:$0xff] %vm746, %v849
            %858 = vst.msk [vmem:[#allocation4 + $0x8] sm:$0xff] %vm746, %v852
            %v859 = vpack.c.bf16 %v788, %v785
            %vm860 = vcmask 64512
            %861 = vst.msk [vmem:[#allocation5] sm:$0xff] %vm860, %v859
            %863 = vrot.lane.b32.xlu0 %v859, 120
            %v864 = vpop.permute.xlu0 %863
            %s866 = scalar_lea.vmem [#allocation5], 8
            %867 = vst.msk [vmem:[%s866] sm:$0xff] %vm860, %v864
            %868 = vrot.lane.b32.xlu0 %v859, 112
            %v869 = vpop.permute.xlu0 %868
            %s871 = scalar_lea.vmem [#allocation5], 16
            %872 = vst.msk [vmem:[%s871] sm:$0xff] %vm860, %v869
            %873 = vrot.lane.b32.xlu0 %v859, 104
            %v874 = vpop.permute.xlu0 %873
            %s876 = scalar_lea.vmem [#allocation5], 24
            %877 = vst.msk [vmem:[%s876] sm:$0xff] %vm860, %v874
          $region96: #{tpu_custom_call.1} parent=87 // pred_fallthru
            _
        $region88: #{tpu_custom_call.1} parent=51 // pred_fallthru
          _
        %s878 = smul.u32 %s38, 8
        %v879 = vld [vmem:[#allocation3] sm:$0xff]
        %v880 = vld [vmem:[#allocation3 + $0x8] sm:$0xff]
        %s881 = scalar_lea.vmem [#allocation4], %s878
        %v882 = vld [vmem:[%s881] sm:$0xff]
        %v884 = vcombine.high %v882, %v882
        %v886 = vunpack.c.l.s4 1966171168
        %v887 = vunpack.c.0.s8 %v886
        %v888 = vlaneseq
        %v889 = vshrl.u32 %v888, 7
        %v890 = vsub.s32 %v887, %v889
        %v891 = vrot.slane %v882, %v890
        %v893 = vunpack.c.l.s4 1966171168
        %v894 = vunpack.c.0.s8 %v893
        %v895 = vlaneseq
        %v896 = vshrl.u32 %v895, 7
        %v897 = vsub.s32 %v894, %v896
        %v898 = vrot.slane %v884, %v897
        %v899 = vcombine.high %v891, %v891
        %v900 = vcombine.high %v898, %v898
        %v902 = vunpack.c.l.s4 1966171168
        %v903 = vunpack.c.0.s8 %v902
        %v904 = vlaneseq
        %v905 = vshrl.u32 %v904, 7
        %v906 = vsub.s32 %v903, %v905
        %v907 = vrot.slane %v891, %v906
        %v909 = vunpack.c.l.s4 1966171168
        %v910 = vunpack.c.0.s8 %v909
        %v911 = vlaneseq
        %v912 = vshrl.u32 %v911, 7
        %v913 = vsub.s32 %v910, %v912
        %v914 = vrot.slane %v898, %v913
        %v916 = vunpack.c.l.s4 1966171168
        %v917 = vunpack.c.0.s8 %v916
        %v918 = vlaneseq
        %v919 = vshrl.u32 %v918, 7
        %v920 = vsub.s32 %v917, %v919
        %v921 = vrot.slane %v899, %v920
        %v923 = vunpack.c.l.s4 1966171168
        %v924 = vunpack.c.0.s8 %v923
        %v925 = vlaneseq
        %v926 = vshrl.u32 %v925, 7
        %v927 = vsub.s32 %v924, %v926
        %v928 = vrot.slane %v900, %v927
        %v929 = vcombine.high %v907, %v907
        %v930 = vcombine.high %v914, %v914
        %v931 = vcombine.high %v921, %v921
        %v932 = vcombine.high %v928, %v928
        %v933 = vlaneseq
        %v934 = vshrl.u32 %v933, 7
        %v935 = vsub.s32 0, %v934
        %v936 = vrot.slane %v907, %v935
        %v937 = vlaneseq
        %v938 = vshrl.u32 %v937, 7
        %v939 = vsub.s32 0, %v938
        %v940 = vrot.slane %v921, %v939
        %v941 = vlaneseq
        %v942 = vshrl.u32 %v941, 7
        %v943 = vsub.s32 0, %v942
        %v944 = vrot.slane %v929, %v943
        %v945 = vlaneseq
        %v946 = vshrl.u32 %v945, 7
        %v947 = vsub.s32 0, %v946
        %v948 = vrot.slane %v931, %v947
        %v949 = vlaneseq
        %v950 = vshrl.u32 %v949, 7
        %v951 = vsub.s32 0, %v950
        %v952 = vrot.slane %v914, %v951
        %v953 = vlaneseq
        %v954 = vshrl.u32 %v953, 7
        %v955 = vsub.s32 0, %v954
        %v956 = vrot.slane %v928, %v955
        %v957 = vlaneseq
        %v958 = vshrl.u32 %v957, 7
        %v959 = vsub.s32 0, %v958
        %v960 = vrot.slane %v930, %v959
        %v961 = vlaneseq
        %v962 = vshrl.u32 %v961, 7
        %v963 = vsub.s32 0, %v962
        %v964 = vrot.slane %v932, %v963
        %v973 = vadd.f32 %v879, %v936
        %v974 = vadd.f32 %v880, %v936
        %v975 = vadd.f32 %v879, %v940
        %v976 = vadd.f32 %v880, %v940
        %v977 = vadd.f32 %v879, %v944
        %v978 = vadd.f32 %v880, %v944
        %v979 = vadd.f32 %v879, %v948
        %v980 = vadd.f32 %v880, %v948
        %v981 = vadd.f32 %v879, %v952
        %v982 = vadd.f32 %v880, %v952
        %v983 = vadd.f32 %v879, %v956
        %v984 = vadd.f32 %v880, %v956
        %v985 = vadd.f32 %v879, %v960
        %v986 = vadd.f32 %v880, %v960
        %v987 = vadd.f32 %v879, %v964
        %v988 = vadd.f32 %v880, %v964
        %v989 = vmul.f32 %v973, 0.2
        %v990 = vmul.f32 %v974, 0.2
        %v991 = vmul.f32 %v975, 0.2
        %v992 = vmul.f32 %v976, 0.2
        %v993 = vmul.f32 %v977, 0.2
        %v994 = vmul.f32 %v978, 0.2
        %v995 = vmul.f32 %v979, 0.2
        %v996 = vmul.f32 %v980, 0.2
        %v997 = vmul.f32 %v981, 0.2
        %v998 = vmul.f32 %v982, 0.2
        %v999 = vmul.f32 %v983, 0.2
        %v1000 = vmul.f32 %v984, 0.2
        %v1001 = vmul.f32 %v985, 0.2
        %v1002 = vmul.f32 %v986, 0.2
        %v1003 = vmul.f32 %v987, 0.2
        %v1004 = vmul.f32 %v988, 0.2
        %v1005 = vmax.f32 %v973, %v989
        %v1006 = vmax.f32 %v974, %v990
        %v1007 = vmax.f32 %v975, %v991
        %v1008 = vmax.f32 %v976, %v992
        %v1009 = vmax.f32 %v977, %v993
        %v1010 = vmax.f32 %v978, %v994
        %v1011 = vmax.f32 %v979, %v995
        %v1012 = vmax.f32 %v980, %v996
        %v1013 = vmax.f32 %v981, %v997
        %v1014 = vmax.f32 %v982, %v998
        %v1015 = vmax.f32 %v983, %v999
        %v1016 = vmax.f32 %v984, %v1000
        %v1017 = vmax.f32 %v985, %v1001
        %v1018 = vmax.f32 %v986, %v1002
        %v1019 = vmax.f32 %v987, %v1003
        %v1020 = vmax.f32 %v988, %v1004
        %v1021 = vpack.c.bf16 %v1006, %v1005
        %v1022 = vpack.c.bf16 %v1008, %v1007
        %v1023 = vpack.c.bf16 %v1010, %v1009
        %v1024 = vpack.c.bf16 %v1012, %v1011
        %v1025 = vpack.c.bf16 %v1014, %v1013
        %v1026 = vpack.c.bf16 %v1016, %v1015
        %v1027 = vpack.c.bf16 %v1018, %v1017
        %v1028 = vpack.c.bf16 %v1020, %v1019
        %v1029 = vld [vmem:[%s486] sm:$0xf]
        %v1030 = vld [vmem:[%s486 + $0x4] sm:$0xf]
        %v1031 = vld [vmem:[%s486 + $0x8] sm:$0xf]
        %v1032 = vld [vmem:[%s486 + $0xc] sm:$0xf]
        %v1037 = vunpack.c.l.b16 %v1029
        %v1038 = vunpack.c.l.b16 %v1030
        %v1039 = vunpack.c.l.b16 %v1031
        %v1040 = vunpack.c.l.b16 %v1032
        %v1041 = vpack.c.b16 %v1038, %v1037
        %v1042 = vpack.c.b16 %v1040, %v1039
        %vm1045 = vcmask 261120
        %v1047 = vsel %vm1045, %v1021, 0
        %v1050 = vsel %vm1045, %v1022, 0
        %v1053 = vsel %vm1045, %v1023, 0
        %v1056 = vsel %vm1045, %v1024, 0
        %v1059 = vsel %vm1045, %v1025, 0
        %v1062 = vsel %vm1045, %v1026, 0
        %v1065 = vsel %vm1045, %v1027, 0
        %v1068 = vsel %vm1045, %v1028, 0
        %1070 = vmatprep.subr.bf16.mxu0 0
        %1071 = vmatpush1.bf16.msra.mxu0 %v1041
        %1072 = vmatprep.subr.bf16.mxu0 0
        %1073 = vmatpush1.bf16.msra.mxu0 %v1042
        %1074 = vmatprep.subr.bf16.mxu0 0
        %1075 = vmatpush1.bf16.msra.mxu0 0
        %1076 = vmatprep.subr.bf16.mxu0 0
        %1077 = vmatpush1.bf16.msra.mxu0 0
        %1078 = vmatprep.subr.bf16.mxu0 0
        %1079 = vmatpush1.bf16.msra.mxu0 0
        %1080 = vmatprep.subr.bf16.mxu0 0
        %1081 = vmatpush1.bf16.msra.mxu0 0
        %1082 = vmatprep.subr.bf16.mxu0 0
        %1083 = vmatpush1.bf16.msra.mxu0 0
        %1084 = vmatprep.subr.bf16.mxu0 0
        %1085 = vmatpush1.bf16.msra.mxu0 0
        %1086 = vmatprep.subr.bf16.mxu0 0
        %1087 = vmatpush1.bf16.msra.mxu0 0
        %1088 = vmatprep.subr.bf16.mxu0 0
        %1089 = vmatpush1.bf16.msra.mxu0 0
        %1090 = vmatprep.subr.bf16.mxu0 0
        %1091 = vmatpush1.bf16.msra.mxu0 0
        %1092 = vmatprep.subr.bf16.mxu0 0
        %1093 = vmatpush1.bf16.msra.mxu0 0
        %1094 = vmatprep.subr.bf16.mxu0 0
        %1095 = vmatpush1.bf16.msra.mxu0 0
        %1096 = vmatprep.subr.bf16.mxu0 0
        %1097 = vmatpush1.bf16.msra.mxu0 0
        %1098 = vmatprep.subr.bf16.mxu0 0
        %1099 = vmatpush1.bf16.msra.mxu0 0
        %1100 = vmatprep.subr.bf16.mxu0 0
        %1101 = vmatpush1.bf16.msra.mxu0 0
        %1102 = vmatprep.mubr.bf16.mxu0 0
        %1103 = vmatmul.mubr.bf16.gmra.mrb[0].mxu0 %v1047
        %v1104 = vpop.f32.mrb[0].mxu0
        %v1105 = vadd.f32 0.0, %v1104
        %v1106 = vpop.f32.mrb[0].mxu0
        %v1107 = vpop.f32.mrb[0].mxu0
        %v1108 = vadd.f32 0.0, %v1107
        %v1109 = vpop.f32.mrb[0].mxu0
        %1110 = vmatprep.mubr.bf16.mxu0 0
        %1111 = vmatmul.mubr.bf16.gmra.mrb[0].mxu0 %v1050
        %v1112 = vpop.f32.mrb[0].mxu0
        %v1113 = vadd.f32 0.0, %v1112
        %v1114 = vpop.f32.mrb[0].mxu0
        %v1115 = vpop.f32.mrb[0].mxu0
        %v1116 = vadd.f32 0.0, %v1115
        %v1117 = vpop.f32.mrb[0].mxu0
        %1118 = vmatprep.mubr.bf16.mxu0 0
        %1119 = vmatmul.mubr.bf16.gmra.mrb[0].mxu0 %v1053
        %v1120 = vpop.f32.mrb[0].mxu0
        %v1121 = vadd.f32 0.0, %v1120
        %v1122 = vpop.f32.mrb[0].mxu0
        %v1123 = vpop.f32.mrb[0].mxu0
        %v1124 = vadd.f32 0.0, %v1123
        %v1125 = vpop.f32.mrb[0].mxu0
        %1126 = vmatprep.mubr.bf16.mxu0 0
        %1127 = vmatmul.mubr.bf16.gmra.mrb[0].mxu0 %v1056
        %v1128 = vpop.f32.mrb[0].mxu0
        %v1129 = vadd.f32 0.0, %v1128
        %v1130 = vpop.f32.mrb[0].mxu0
        %v1131 = vpop.f32.mrb[0].mxu0
        %v1132 = vadd.f32 0.0, %v1131
        %v1133 = vpop.f32.mrb[0].mxu0
        %1134 = vmatprep.mubr.bf16.mxu0 0
        %1135 = vmatmul.mubr.bf16.gmra.mrb[0].mxu0 %v1059
        %v1136 = vpop.f32.mrb[0].mxu0
        %v1137 = vadd.f32 0.0, %v1136
        %v1138 = vpop.f32.mrb[0].mxu0
        %v1139 = vpop.f32.mrb[0].mxu0
        %v1140 = vadd.f32 0.0, %v1139
        %v1141 = vpop.f32.mrb[0].mxu0
        %1142 = vmatprep.mubr.bf16.mxu0 0
        %1143 = vmatmul.mubr.bf16.gmra.mrb[0].mxu0 %v1062
        %v1144 = vpop.f32.mrb[0].mxu0
        %v1145 = vadd.f32 0.0, %v1144
        %v1146 = vpop.f32.mrb[0].mxu0
        %v1147 = vpop.f32.mrb[0].mxu0
        %v1148 = vadd.f32 0.0, %v1147
        %v1149 = vpop.f32.mrb[0].mxu0
        %1150 = vmatprep.mubr.bf16.mxu0 0
        %1151 = vmatmul.mubr.bf16.gmra.mrb[0].mxu0 %v1065
        %v1152 = vpop.f32.mrb[0].mxu0
        %v1153 = vadd.f32 0.0, %v1152
        %v1154 = vpop.f32.mrb[0].mxu0
        %v1155 = vpop.f32.mrb[0].mxu0
        %v1156 = vadd.f32 0.0, %v1155
        %v1157 = vpop.f32.mrb[0].mxu0
        %1158 = vmatprep.mubr.bf16.mxu0 0
        %1159 = vmatmul.mubr.bf16.gmra.mrb[0].mxu0 %v1068
        %v1160 = vpop.f32.mrb[0].mxu0
        %v1161 = vadd.f32 0.0, %v1160
        %v1162 = vpop.f32.mrb[0].mxu0
        %v1163 = vpop.f32.mrb[0].mxu0
        %v1164 = vadd.f32 0.0, %v1163
        %v1165 = vpop.f32.mrb[0].mxu0
        %1166 = vdwg.mxu0
        %1167 = vxpose.xlu0.b32.start [1/16] %v1105, 128
        %1168 = vxpose.xlu0.b32.cont [2/16] %v1108, 128
        %1169 = vxpose.xlu0.b32.cont [3/16] 0.0, 128
        %1170 = vxpose.xlu0.b32.cont [4/16] 0.0, 128
        %1171 = vxpose.xlu0.b32.cont [5/16] 0.0, 128
        %1172 = vxpose.xlu0.b32.cont [6/16] 0.0, 128
        %1173 = vxpose.xlu0.b32.cont [7/16] 0.0, 128
        %1174 = vxpose.xlu0.b32.cont [8/16] 0.0, 128
        %1175 = vxpose.xlu0.b32.cont [9/16] 0.0, 128
        %1176 = vxpose.xlu0.b32.cont [10/16] 0.0, 128
        %1177 = vxpose.xlu0.b32.cont [11/16] 0.0, 128
        %1178 = vxpose.xlu0.b32.cont [12/16] 0.0, 128
        %1179 = vxpose.xlu0.b32.cont [13/16] 0.0, 128
        %1180 = vxpose.xlu0.b32.cont [14/16] 0.0, 128
        %1181 = vxpose.xlu0.b32.cont [15/16] 0.0, 128
        %1182 = vxpose.xlu0.b32.end [16/16] 0.0, 128
        %v1183 = vpop.trf.xlu0
        %v1184 = vpop.trf.xlu0
        %v1185 = vpop.trf.xlu0
        %v1186 = vpop.trf.xlu0
        %v1187 = vpop.trf.xlu0
        %v1188 = vpop.trf.xlu0
        %v1189 = vpop.trf.xlu0
        %v1190 = vpop.trf.xlu0
        %v1191 = vpop.trf.xlu0
        %v1192 = vpop.trf.xlu0
        %v1193 = vpop.trf.xlu0
        %v1194 = vpop.trf.xlu0
        %v1195 = vpop.trf.xlu0
        %v1196 = vpop.trf.xlu0
        %v1197 = vpop.trf.xlu0
        %v1198 = vpop.trf.xlu0
        %1199 = vxpose.xlu0.b32.start [1/16] %v1113, 128
        %1200 = vxpose.xlu0.b32.cont [2/16] %v1116, 128
        %1201 = vxpose.xlu0.b32.cont [3/16] 0.0, 128
        %1202 = vxpose.xlu0.b32.cont [4/16] 0.0, 128
        %1203 = vxpose.xlu0.b32.cont [5/16] 0.0, 128
        %1204 = vxpose.xlu0.b32.cont [6/16] 0.0, 128
        %1205 = vxpose.xlu0.b32.cont [7/16] 0.0, 128
        %1206 = vxpose.xlu0.b32.cont [8/16] 0.0, 128
        %1207 = vxpose.xlu0.b32.cont [9/16] 0.0, 128
        %1208 = vxpose.xlu0.b32.cont [10/16] 0.0, 128
        %1209 = vxpose.xlu0.b32.cont [11/16] 0.0, 128
        %1210 = vxpose.xlu0.b32.cont [12/16] 0.0, 128
        %1211 = vxpose.xlu0.b32.cont [13/16] 0.0, 128
        %1212 = vxpose.xlu0.b32.cont [14/16] 0.0, 128
        %1213 = vxpose.xlu0.b32.cont [15/16] 0.0, 128
        %1214 = vxpose.xlu0.b32.end [16/16] 0.0, 128
        %v1215 = vpop.trf.xlu0
        %v1216 = vpop.trf.xlu0
        %v1217 = vpop.trf.xlu0
        %v1218 = vpop.trf.xlu0
        %v1219 = vpop.trf.xlu0
        %v1220 = vpop.trf.xlu0
        %v1221 = vpop.trf.xlu0
        %v1222 = vpop.trf.xlu0
        %v1223 = vpop.trf.xlu0
        %v1224 = vpop.trf.xlu0
        %v1225 = vpop.trf.xlu0
        %v1226 = vpop.trf.xlu0
        %v1227 = vpop.trf.xlu0
        %v1228 = vpop.trf.xlu0
        %v1229 = vpop.trf.xlu0
        %v1230 = vpop.trf.xlu0
        %1231 = vxpose.xlu0.b32.start [1/16] %v1121, 128
        %1232 = vxpose.xlu0.b32.cont [2/16] %v1124, 128
        %1233 = vxpose.xlu0.b32.cont [3/16] 0.0, 128
        %1234 = vxpose.xlu0.b32.cont [4/16] 0.0, 128
        %1235 = vxpose.xlu0.b32.cont [5/16] 0.0, 128
        %1236 = vxpose.xlu0.b32.cont [6/16] 0.0, 128
        %1237 = vxpose.xlu0.b32.cont [7/16] 0.0, 128
        %1238 = vxpose.xlu0.b32.cont [8/16] 0.0, 128
        %1239 = vxpose.xlu0.b32.cont [9/16] 0.0, 128
        %1240 = vxpose.xlu0.b32.cont [10/16] 0.0, 128
        %1241 = vxpose.xlu0.b32.cont [11/16] 0.0, 128
        %1242 = vxpose.xlu0.b32.cont [12/16] 0.0, 128
        %1243 = vxpose.xlu0.b32.cont [13/16] 0.0, 128
        %1244 = vxpose.xlu0.b32.cont [14/16] 0.0, 128
        %1245 = vxpose.xlu0.b32.cont [15/16] 0.0, 128
        %1246 = vxpose.xlu0.b32.end [16/16] 0.0, 128
        %v1247 = vpop.trf.xlu0
        %v1248 = vpop.trf.xlu0
        %v1249 = vpop.trf.xlu0
        %v1250 = vpop.trf.xlu0
        %v1251 = vpop.trf.xlu0
        %v1252 = vpop.trf.xlu0
        %v1253 = vpop.trf.xlu0
        %v1254 = vpop.trf.xlu0
        %v1255 = vpop.trf.xlu0
        %v1256 = vpop.trf.xlu0
        %v1257 = vpop.trf.xlu0
        %v1258 = vpop.trf.xlu0
        %v1259 = vpop.trf.xlu0
        %v1260 = vpop.trf.xlu0
        %v1261 = vpop.trf.xlu0
        %v1262 = vpop.trf.xlu0
        %1263 = vxpose.xlu0.b32.start [1/16] %v1129, 128
        %1264 = vxpose.xlu0.b32.cont [2/16] %v1132, 128
        %1265 = vxpose.xlu0.b32.cont [3/16] 0.0, 128
        %1266 = vxpose.xlu0.b32.cont [4/16] 0.0, 128
        %1267 = vxpose.xlu0.b32.cont [5/16] 0.0, 128
        %1268 = vxpose.xlu0.b32.cont [6/16] 0.0, 128
        %1269 = vxpose.xlu0.b32.cont [7/16] 0.0, 128
        %1270 = vxpose.xlu0.b32.cont [8/16] 0.0, 128
        %1271 = vxpose.xlu0.b32.cont [9/16] 0.0, 128
        %1272 = vxpose.xlu0.b32.cont [10/16] 0.0, 128
        %1273 = vxpose.xlu0.b32.cont [11/16] 0.0, 128
        %1274 = vxpose.xlu0.b32.cont [12/16] 0.0, 128
        %1275 = vxpose.xlu0.b32.cont [13/16] 0.0, 128
        %1276 = vxpose.xlu0.b32.cont [14/16] 0.0, 128
        %1277 = vxpose.xlu0.b32.cont [15/16] 0.0, 128
        %1278 = vxpose.xlu0.b32.end [16/16] 0.0, 128
        %v1279 = vpop.trf.xlu0
        %v1280 = vpop.trf.xlu0
        %v1281 = vpop.trf.xlu0
        %v1282 = vpop.trf.xlu0
        %v1283 = vpop.trf.xlu0
        %v1284 = vpop.trf.xlu0
        %v1285 = vpop.trf.xlu0
        %v1286 = vpop.trf.xlu0
        %v1287 = vpop.trf.xlu0
        %v1288 = vpop.trf.xlu0
        %v1289 = vpop.trf.xlu0
        %v1290 = vpop.trf.xlu0
        %v1291 = vpop.trf.xlu0
        %v1292 = vpop.trf.xlu0
        %v1293 = vpop.trf.xlu0
        %v1294 = vpop.trf.xlu0
        %1295 = vxpose.xlu0.b32.start [1/16] %v1137, 128
        %1296 = vxpose.xlu0.b32.cont [2/16] %v1140, 128
        %1297 = vxpose.xlu0.b32.cont [3/16] 0.0, 128
        %1298 = vxpose.xlu0.b32.cont [4/16] 0.0, 128
        %1299 = vxpose.xlu0.b32.cont [5/16] 0.0, 128
        %1300 = vxpose.xlu0.b32.cont [6/16] 0.0, 128
        %1301 = vxpose.xlu0.b32.cont [7/16] 0.0, 128
        %1302 = vxpose.xlu0.b32.cont [8/16] 0.0, 128
        %1303 = vxpose.xlu0.b32.cont [9/16] 0.0, 128
        %1304 = vxpose.xlu0.b32.cont [10/16] 0.0, 128
        %1305 = vxpose.xlu0.b32.cont [11/16] 0.0, 128
        %1306 = vxpose.xlu0.b32.cont [12/16] 0.0, 128
        %1307 = vxpose.xlu0.b32.cont [13/16] 0.0, 128
        %1308 = vxpose.xlu0.b32.cont [14/16] 0.0, 128
        %1309 = vxpose.xlu0.b32.cont [15/16] 0.0, 128
        %1310 = vxpose.xlu0.b32.end [16/16] 0.0, 128
        %v1311 = vpop.trf.xlu0
        %v1312 = vpop.trf.xlu0
        %v1313 = vpop.trf.xlu0
        %v1314 = vpop.trf.xlu0
        %v1315 = vpop.trf.xlu0
        %v1316 = vpop.trf.xlu0
        %v1317 = vpop.trf.xlu0
        %v1318 = vpop.trf.xlu0
        %v1319 = vpop.trf.xlu0
        %v1320 = vpop.trf.xlu0
        %v1321 = vpop.trf.xlu0
        %v1322 = vpop.trf.xlu0
        %v1323 = vpop.trf.xlu0
        %v1324 = vpop.trf.xlu0
        %v1325 = vpop.trf.xlu0
        %v1326 = vpop.trf.xlu0
        %1327 = vxpose.xlu0.b32.start [1/16] %v1145, 128
        %1328 = vxpose.xlu0.b32.cont [2/16] %v1148, 128
        %1329 = vxpose.xlu0.b32.cont [3/16] 0.0, 128
        %1330 = vxpose.xlu0.b32.cont [4/16] 0.0, 128
        %1331 = vxpose.xlu0.b32.cont [5/16] 0.0, 128
        %1332 = vxpose.xlu0.b32.cont [6/16] 0.0, 128
        %1333 = vxpose.xlu0.b32.cont [7/16] 0.0, 128
        %1334 = vxpose.xlu0.b32.cont [8/16] 0.0, 128
        %1335 = vxpose.xlu0.b32.cont [9/16] 0.0, 128
        %1336 = vxpose.xlu0.b32.cont [10/16] 0.0, 128
        %1337 = vxpose.xlu0.b32.cont [11/16] 0.0, 128
        %1338 = vxpose.xlu0.b32.cont [12/16] 0.0, 128
        %1339 = vxpose.xlu0.b32.cont [13/16] 0.0, 128
        %1340 = vxpose.xlu0.b32.cont [14/16] 0.0, 128
        %1341 = vxpose.xlu0.b32.cont [15/16] 0.0, 128
        %1342 = vxpose.xlu0.b32.end [16/16] 0.0, 128
        %v1343 = vpop.trf.xlu0
        %v1344 = vpop.trf.xlu0
        %v1345 = vpop.trf.xlu0
        %v1346 = vpop.trf.xlu0
        %v1347 = vpop.trf.xlu0
        %v1348 = vpop.trf.xlu0
        %v1349 = vpop.trf.xlu0
        %v1350 = vpop.trf.xlu0
        %v1351 = vpop.trf.xlu0
        %v1352 = vpop.trf.xlu0
        %v1353 = vpop.trf.xlu0
        %v1354 = vpop.trf.xlu0
        %v1355 = vpop.trf.xlu0
        %v1356 = vpop.trf.xlu0
        %v1357 = vpop.trf.xlu0
        %v1358 = vpop.trf.xlu0
        %1359 = vxpose.xlu0.b32.start [1/16] %v1153, 128
        %1360 = vxpose.xlu0.b32.cont [2/16] %v1156, 128
        %1361 = vxpose.xlu0.b32.cont [3/16] 0.0, 128
        %1362 = vxpose.xlu0.b32.cont [4/16] 0.0, 128
        %1363 = vxpose.xlu0.b32.cont [5/16] 0.0, 128
        %1364 = vxpose.xlu0.b32.cont [6/16] 0.0, 128
        %1365 = vxpose.xlu0.b32.cont [7/16] 0.0, 128
        %1366 = vxpose.xlu0.b32.cont [8/16] 0.0, 128
        %1367 = vxpose.xlu0.b32.cont [9/16] 0.0, 128
        %1368 = vxpose.xlu0.b32.cont [10/16] 0.0, 128
        %1369 = vxpose.xlu0.b32.cont [11/16] 0.0, 128
        %1370 = vxpose.xlu0.b32.cont [12/16] 0.0, 128
        %1371 = vxpose.xlu0.b32.cont [13/16] 0.0, 128
        %1372 = vxpose.xlu0.b32.cont [14/16] 0.0, 128
        %1373 = vxpose.xlu0.b32.cont [15/16] 0.0, 128
        %1374 = vxpose.xlu0.b32.end [16/16] 0.0, 128
        %v1375 = vpop.trf.xlu0
        %v1376 = vpop.trf.xlu0
        %v1377 = vpop.trf.xlu0
        %v1378 = vpop.trf.xlu0
        %v1379 = vpop.trf.xlu0
        %v1380 = vpop.trf.xlu0
        %v1381 = vpop.trf.xlu0
        %v1382 = vpop.trf.xlu0
        %v1383 = vpop.trf.xlu0
        %v1384 = vpop.trf.xlu0
        %v1385 = vpop.trf.xlu0
        %v1386 = vpop.trf.xlu0
        %v1387 = vpop.trf.xlu0
        %v1388 = vpop.trf.xlu0
        %v1389 = vpop.trf.xlu0
        %v1390 = vpop.trf.xlu0
        %1391 = vxpose.xlu0.b32.start [1/16] %v1161, 128
        %1392 = vxpose.xlu0.b32.cont [2/16] %v1164, 128
        %1393 = vxpose.xlu0.b32.cont [3/16] 0.0, 128
        %1394 = vxpose.xlu0.b32.cont [4/16] 0.0, 128
        %1395 = vxpose.xlu0.b32.cont [5/16] 0.0, 128
        %1396 = vxpose.xlu0.b32.cont [6/16] 0.0, 128
        %1397 = vxpose.xlu0.b32.cont [7/16] 0.0, 128
        %1398 = vxpose.xlu0.b32.cont [8/16] 0.0, 128
        %1399 = vxpose.xlu0.b32.cont [9/16] 0.0, 128
        %1400 = vxpose.xlu0.b32.cont [10/16] 0.0, 128
        %1401 = vxpose.xlu0.b32.cont [11/16] 0.0, 128
        %1402 = vxpose.xlu0.b32.cont [12/16] 0.0, 128
        %1403 = vxpose.xlu0.b32.cont [13/16] 0.0, 128
        %1404 = vxpose.xlu0.b32.cont [14/16] 0.0, 128
        %1405 = vxpose.xlu0.b32.cont [15/16] 0.0, 128
        %1406 = vxpose.xlu0.b32.end [16/16] 0.0, 128
        %v1407 = vpop.trf.xlu0
        %v1408 = vpop.trf.xlu0
        %v1409 = vpop.trf.xlu0
        %v1410 = vpop.trf.xlu0
        %v1411 = vpop.trf.xlu0
        %v1412 = vpop.trf.xlu0
        %v1413 = vpop.trf.xlu0
        %v1414 = vpop.trf.xlu0
        %v1415 = vpop.trf.xlu0
        %v1416 = vpop.trf.xlu0
        %v1417 = vpop.trf.xlu0
        %v1418 = vpop.trf.xlu0
        %v1419 = vpop.trf.xlu0
        %v1420 = vpop.trf.xlu0
        %v1421 = vpop.trf.xlu0
        %v1422 = vpop.trf.xlu0
        %v1423 = vcombine.low %v1183, %v1247
        %v1425 = vunpack.c.l.s4 1983009808
        %v1426 = vunpack.c.0.s8 %v1425
        %v1427 = vlaneseq
        %v1428 = vshrl.u32 %v1427, 7
        %v1429 = vsub.s32 %v1426, %v1428
        %v1430 = vrot.slane %v1423, %v1429
        %v1431 = vcombine.low %v1215, %v1279
        %v1433 = vunpack.c.l.s4 1983009808
        %v1434 = vunpack.c.0.s8 %v1433
        %v1435 = vlaneseq
        %v1436 = vshrl.u32 %v1435, 7
        %v1437 = vsub.s32 %v1434, %v1436
        %v1438 = vrot.slane %v1431, %v1437
        %v1439 = vcombine.low %v1311, %v1375
        %v1441 = vunpack.c.l.s4 1983009808
        %v1442 = vunpack.c.0.s8 %v1441
        %v1443 = vlaneseq
        %v1444 = vshrl.u32 %v1443, 7
        %v1445 = vsub.s32 %v1442, %v1444
        %v1446 = vrot.slane %v1439, %v1445
        %v1447 = vcombine.low %v1343, %v1407
        %v1449 = vunpack.c.l.s4 1983009808
        %v1450 = vunpack.c.0.s8 %v1449
        %v1451 = vlaneseq
        %v1452 = vshrl.u32 %v1451, 7
        %v1453 = vsub.s32 %v1450, %v1452
        %v1454 = vrot.slane %v1447, %v1453
        %v1455 = vcombine.low %v1430, %v1438
        %v1456 = vcombine.high %v1430, %v1438
        %v1458 = vunpack.c.l.s4 1934713408
        %v1459 = vunpack.c.0.s8 %v1458
        %v1460 = vlaneseq
        %v1461 = vshrl.u32 %v1460, 7
        %v1462 = vsub.s32 %v1459, %v1461
        %v1463 = vrot.slane %v1455, %v1462
        %v1465 = vunpack.c.l.s4 1934713408
        %v1466 = vunpack.c.0.s8 %v1465
        %v1467 = vlaneseq
        %v1468 = vshrl.u32 %v1467, 7
        %v1469 = vsub.s32 %v1466, %v1468
        %v1470 = vrot.slane %v1456, %v1469
        %v1471 = vcombine.low %v1446, %v1454
        %v1472 = vcombine.high %v1446, %v1454
        %v1474 = vunpack.c.l.s4 1934713408
        %v1475 = vunpack.c.0.s8 %v1474
        %v1476 = vlaneseq
        %v1477 = vshrl.u32 %v1476, 7
        %v1478 = vsub.s32 %v1475, %v1477
        %v1479 = vrot.slane %v1471, %v1478
        %v1481 = vunpack.c.l.s4 1934713408
        %v1482 = vunpack.c.0.s8 %v1481
        %v1483 = vlaneseq
        %v1484 = vshrl.u32 %v1483, 7
        %v1485 = vsub.s32 %v1482, %v1484
        %v1486 = vrot.slane %v1472, %v1485
        %v1487 = vcombine.low %v1463, %v1479
        %v1488 = vcombine.high %v1463, %v1479
        %v1489 = vcombine.low %v1470, %v1486
        %v1490 = vcombine.high %v1470, %v1486
        %v1491 = vld [vmem:[%s443] sm:$0xff]
        %v1492 = vadd.f32 %v1487, %v1491
        %v1493 = vadd.f32 %v1488, %v1491
        %v1494 = vadd.f32 %v1489, %v1491
        %v1495 = vadd.f32 %v1490, %v1491
        %vm1496 = vcmask 130048
        %v1497 = vsel %vm1496, %v1492, -inf
        %1498 = vmax.xlane.f32.xlu0 %v1497
        %v1499 = vpop.xlane.xlu0 %1498
        %v1500 = vsel %vm1496, %v1493, -inf
        %1501 = vmax.xlane.f32.xlu0 %v1500
        %v1502 = vpop.xlane.xlu0 %1501
        %v1503 = vsel %vm1496, %v1494, -inf
        %1504 = vmax.xlane.f32.xlu0 %v1503
        %v1505 = vpop.xlane.xlu0 %1504
        %v1506 = vsel %vm1496, %v1495, -inf
        %1507 = vmax.xlane.f32.xlu0 %v1506
        %v1508 = vpop.xlane.xlu0 %1507
        %v1509 = vsub.f32 %v1492, %v1499
        %v1510 = vsub.f32 %v1493, %v1502
        %v1511 = vsub.f32 %v1494, %v1505
        %v1512 = vsub.f32 %v1495, %v1508
        %v1513 = vmul.f32 %v1509, 1.442695
        %v1514 = vpow.pop %v1513
        %v1515 = vmul.f32 %v1510, 1.442695
        %v1516 = vpow.pop %v1515
        %v1517 = vmul.f32 %v1511, 1.442695
        %v1518 = vpow.pop %v1517
        %v1519 = vmul.f32 %v1512, 1.442695
        %v1520 = vpow.pop %v1519
        %v1521 = vsel %vm1496, %v1514, 0.0
        %1522 = vadd.xlane.f32.xlu0 %v1521
        %v1523 = vpop.xlane.xlu0 %1522
        %v1524 = vsel %vm1496, %v1516, 0.0
        %1525 = vadd.xlane.f32.xlu0 %v1524
        %v1526 = vpop.xlane.xlu0 %1525
        %v1527 = vsel %vm1496, %v1518, 0.0
        %1528 = vadd.xlane.f32.xlu0 %v1527
        %v1529 = vpop.xlane.xlu0 %1528
        %v1530 = vsel %vm1496, %v1520, 0.0
        %1531 = vadd.xlane.f32.xlu0 %v1530
        %v1532 = vpop.xlane.xlu0 %1531
        %v1533 = vrcp.pop %v1523
        %v1534 = vrcp.pop %v1526
        %v1535 = vrcp.pop %v1529
        %v1536 = vrcp.pop %v1532
        %v1537 = vmul.f32 %v1514, %v1533
        %v1538 = vmul.f32 %v1516, %v1534
        %v1539 = vmul.f32 %v1518, %v1535
        %v1540 = vmul.f32 %v1520, %v1536
        %v1541 = vpack.c.bf16 %v1537, %v1537
        %v1542 = vpack.c.bf16 %v1538, %v1538
        %v1543 = vpack.c.bf16 %v1539, %v1539
        %v1544 = vpack.c.bf16 %v1540, %v1540
        %v1545 = vld [vmem:[#allocation5] sm:$0xff]
        %v1546 = vld [vmem:[#allocation5 + $0x8] sm:$0xff]
        %v1547 = vld [vmem:[#allocation5 + $0x10] sm:$0xff]
        %v1548 = vld [vmem:[#allocation5 + $0x18] sm:$0xff]
        %v1550 = vsel %vm1496, %v1541, 0
        %1552 = vmatprep.subr.bf16.mxu0 0
        %1553 = vmatpush1.bf16.msra.mxu0 %v1545
        %1554 = vmatprep.subr.bf16.mxu0 0
        %1555 = vmatpush1.bf16.msra.mxu0 0
        %1556 = vmatprep.subr.bf16.mxu0 0
        %1557 = vmatpush1.bf16.msra.mxu0 0
        %1558 = vmatprep.subr.bf16.mxu0 0
        %1559 = vmatpush1.bf16.msra.mxu0 0
        %1560 = vmatprep.subr.bf16.mxu0 0
        %1561 = vmatpush1.bf16.msra.mxu0 0
        %1562 = vmatprep.subr.bf16.mxu0 0
        %1563 = vmatpush1.bf16.msra.mxu0 0
        %1564 = vmatprep.subr.bf16.mxu0 0
        %1565 = vmatpush1.bf16.msra.mxu0 0
        %1566 = vmatprep.subr.bf16.mxu0 0
        %1567 = vmatpush1.bf16.msra.mxu0 0
        %1568 = vmatprep.subr.bf16.mxu0 0
        %1569 = vmatpush1.bf16.msra.mxu0 0
        %1570 = vmatprep.subr.bf16.mxu0 0
        %1571 = vmatpush1.bf16.msra.mxu0 0
        %1572 = vmatprep.subr.bf16.mxu0 0
        %1573 = vmatpush1.bf16.msra.mxu0 0
        %1574 = vmatprep.subr.bf16.mxu0 0
        %1575 = vmatpush1.bf16.msra.mxu0 0
        %1576 = vmatprep.subr.bf16.mxu0 0
        %1577 = vmatpush1.bf16.msra.mxu0 0
        %1578 = vmatprep.subr.bf16.mxu0 0
        %1579 = vmatpush1.bf16.msra.mxu0 0
        %1580 = vmatprep.subr.bf16.mxu0 0
        %1581 = vmatpush1.bf16.msra.mxu0 0
        %1582 = vmatprep.subr.bf16.mxu0 0
        %1583 = vmatpush1.bf16.msra.mxu0 0
        %1584 = vmatprep.mubr.bf16.mxu0 0
        %1585 = vmatmul.mubr.bf16.gmra.mrb[0].mxu0 %v1550
        %v1586 = vpop.f32.mrb[0].mxu0
        %v1587 = vadd.f32 0.0, %v1586
        %v1588 = vpop.f32.mrb[0].mxu0
        %v1589 = vpop.f32.mrb[0].mxu0
        %v1590 = vpop.f32.mrb[0].mxu0
        %1591 = vdwg.mxu0
        %v1593 = vsel %vm1496, %v1542, 0
        %1595 = vmatprep.subr.bf16.mxu0 0
        %1596 = vmatpush1.bf16.msra.mxu0 %v1546
        %1597 = vmatprep.subr.bf16.mxu0 0
        %1598 = vmatpush1.bf16.msra.mxu0 0
        %1599 = vmatprep.subr.bf16.mxu0 0
        %1600 = vmatpush1.bf16.msra.mxu0 0
        %1601 = vmatprep.subr.bf16.mxu0 0
        %1602 = vmatpush1.bf16.msra.mxu0 0
        %1603 = vmatprep.subr.bf16.mxu0 0
        %1604 = vmatpush1.bf16.msra.mxu0 0
        %1605 = vmatprep.subr.bf16.mxu0 0
        %1606 = vmatpush1.bf16.msra.mxu0 0
        %1607 = vmatprep.subr.bf16.mxu0 0
        %1608 = vmatpush1.bf16.msra.mxu0 0
        %1609 = vmatprep.subr.bf16.mxu0 0
        %1610 = vmatpush1.bf16.msra.mxu0 0
        %1611 = vmatprep.subr.bf16.mxu0 0
        %1612 = vmatpush1.bf16.msra.mxu0 0
        %1613 = vmatprep.subr.bf16.mxu0 0
        %1614 = vmatpush1.bf16.msra.mxu0 0
        %1615 = vmatprep.subr.bf16.mxu0 0
        %1616 = vmatpush1.bf16.msra.mxu0 0
        %1617 = vmatprep.subr.bf16.mxu0 0
        %1618 = vmatpush1.bf16.msra.mxu0 0
        %1619 = vmatprep.subr.bf16.mxu0 0
        %1620 = vmatpush1.bf16.msra.mxu0 0
        %1621 = vmatprep.subr.bf16.mxu0 0
        %1622 = vmatpush1.bf16.msra.mxu0 0
        %1623 = vmatprep.subr.bf16.mxu0 0
        %1624 = vmatpush1.bf16.msra.mxu0 0
        %1625 = vmatprep.subr.bf16.mxu0 0
        %1626 = vmatpush1.bf16.msra.mxu0 0
        %1627 = vmatprep.mubr.bf16.mxu0 0
        %1628 = vmatmul.mubr.bf16.gmra.mrb[0].mxu0 %v1593
        %v1629 = vpop.f32.mrb[0].mxu0
        %v1630 = vadd.f32 0.0, %v1629
        %v1631 = vpop.f32.mrb[0].mxu0
        %v1632 = vpop.f32.mrb[0].mxu0
        %v1633 = vpop.f32.mrb[0].mxu0
        %1634 = vdwg.mxu0
        %v1636 = vsel %vm1496, %v1543, 0
        %1638 = vmatprep.subr.bf16.mxu0 0
        %1639 = vmatpush1.bf16.msra.mxu0 %v1547
        %1640 = vmatprep.subr.bf16.mxu0 0
        %1641 = vmatpush1.bf16.msra.mxu0 0
        %1642 = vmatprep.subr.bf16.mxu0 0
        %1643 = vmatpush1.bf16.msra.mxu0 0
        %1644 = vmatprep.subr.bf16.mxu0 0
        %1645 = vmatpush1.bf16.msra.mxu0 0
        %1646 = vmatprep.subr.bf16.mxu0 0
        %1647 = vmatpush1.bf16.msra.mxu0 0
        %1648 = vmatprep.subr.bf16.mxu0 0
        %1649 = vmatpush1.bf16.msra.mxu0 0
        %1650 = vmatprep.subr.bf16.mxu0 0
        %1651 = vmatpush1.bf16.msra.mxu0 0
        %1652 = vmatprep.subr.bf16.mxu0 0
        %1653 = vmatpush1.bf16.msra.mxu0 0
        %1654 = vmatprep.subr.bf16.mxu0 0
        %1655 = vmatpush1.bf16.msra.mxu0 0
        %1656 = vmatprep.subr.bf16.mxu0 0
        %1657 = vmatpush1.bf16.msra.mxu0 0
        %1658 = vmatprep.subr.bf16.mxu0 0
        %1659 = vmatpush1.bf16.msra.mxu0 0
        %1660 = vmatprep.subr.bf16.mxu0 0
        %1661 = vmatpush1.bf16.msra.mxu0 0
        %1662 = vmatprep.subr.bf16.mxu0 0
        %1663 = vmatpush1.bf16.msra.mxu0 0
        %1664 = vmatprep.subr.bf16.mxu0 0
        %1665 = vmatpush1.bf16.msra.mxu0 0
        %1666 = vmatprep.subr.bf16.mxu0 0
        %1667 = vmatpush1.bf16.msra.mxu0 0
        %1668 = vmatprep.subr.bf16.mxu0 0
        %1669 = vmatpush1.bf16.msra.mxu0 0
        %1670 = vmatprep.mubr.bf16.mxu0 0
        %1671 = vmatmul.mubr.bf16.gmra.mrb[0].mxu0 %v1636
        %v1672 = vpop.f32.mrb[0].mxu0
        %v1673 = vadd.f32 0.0, %v1672
        %v1674 = vpop.f32.mrb[0].mxu0
        %v1675 = vpop.f32.mrb[0].mxu0
        %v1676 = vpop.f32.mrb[0].mxu0
        %1677 = vdwg.mxu0
        %v1679 = vsel %vm1496, %v1544, 0
        %1681 = vmatprep.subr.bf16.mxu0 0
        %1682 = vmatpush1.bf16.msra.mxu0 %v1548
        %1683 = vmatprep.subr.bf16.mxu0 0
        %1684 = vmatpush1.bf16.msra.mxu0 0
        %1685 = vmatprep.subr.bf16.mxu0 0
        %1686 = vmatpush1.bf16.msra.mxu0 0
        %1687 = vmatprep.subr.bf16.mxu0 0
        %1688 = vmatpush1.bf16.msra.mxu0 0
        %1689 = vmatprep.subr.bf16.mxu0 0
        %1690 = vmatpush1.bf16.msra.mxu0 0
        %1691 = vmatprep.subr.bf16.mxu0 0
        %1692 = vmatpush1.bf16.msra.mxu0 0
        %1693 = vmatprep.subr.bf16.mxu0 0
        %1694 = vmatpush1.bf16.msra.mxu0 0
        %1695 = vmatprep.subr.bf16.mxu0 0
        %1696 = vmatpush1.bf16.msra.mxu0 0
        %1697 = vmatprep.subr.bf16.mxu0 0
        %1698 = vmatpush1.bf16.msra.mxu0 0
        %1699 = vmatprep.subr.bf16.mxu0 0
        %1700 = vmatpush1.bf16.msra.mxu0 0
        %1701 = vmatprep.subr.bf16.mxu0 0
        %1702 = vmatpush1.bf16.msra.mxu0 0
        %1703 = vmatprep.subr.bf16.mxu0 0
        %1704 = vmatpush1.bf16.msra.mxu0 0
        %1705 = vmatprep.subr.bf16.mxu0 0
        %1706 = vmatpush1.bf16.msra.mxu0 0
        %1707 = vmatprep.subr.bf16.mxu0 0
        %1708 = vmatpush1.bf16.msra.mxu0 0
        %1709 = vmatprep.subr.bf16.mxu0 0
        %1710 = vmatpush1.bf16.msra.mxu0 0
        %1711 = vmatprep.subr.bf16.mxu0 0
        %1712 = vmatpush1.bf16.msra.mxu0 0
        %1713 = vmatprep.mubr.bf16.mxu0 0
        %1714 = vmatmul.mubr.bf16.gmra.mrb[0].mxu0 %v1679
        %v1715 = vpop.f32.mrb[0].mxu0
        %v1716 = vadd.f32 0.0, %v1715
        %v1717 = vpop.f32.mrb[0].mxu0
        %v1718 = vpop.f32.mrb[0].mxu0
        %v1719 = vpop.f32.mrb[0].mxu0
        %1720 = vdwg.mxu0
        %1722 = vrot.lane.b32.xlu0 %v1630, 8
        %v1723 = vpop.permute.xlu0 %1722
        %1726 = vrot.lane.b32.xlu0 %v1673, 16
        %v1727 = vpop.permute.xlu0 %1726
        %1730 = vrot.lane.b32.xlu0 %v1716, 24
        %v1731 = vpop.permute.xlu0 %1730
        %vm1733 = vcmask 64512
        %v1734 = vsel %vm1733, %v1587, %v1723
        %v1735 = vsel %vm1496, %v1734, %v1727
        %vm1736 = vcmask 195584
        %v1737 = vsel %vm1736, %v1735, %v1731
        %v1738 = vld [vmem:[%s494] sm:$0x1]
        %v1740 = vlaneseq
        %v1741 = vshrl.u32 %v1740, 7
        %v1742 = vsub.s32 0, %v1741
        %v1743 = vrot.slane %v1738, %v1742
        %v1745 = vadd.f32 %v1737, %v1743
        %p1746 = scmp.eq.s32.totalorder %s37, 1
        // Predicated region
        $region97: #{tpu_custom_call.1} parent=51 // pred_check
          %p1747 = pneg %p1746
        $region98: #{tpu_custom_call.1} parent=51 // pred_check_branch
          %1749 = sbr.rel (%p1747) target = $region100
        $region99: #{tpu_custom_call.1} parent=51 // pred_region
          %s1750 = scalar_lea.vmem [#allocation20], %s878
          %1751 = vst.msk [vmem:[%s1750] sm:$0xff] %vm1045, %v1745
        $region100: #{tpu_custom_call.1} parent=51 // pred_fallthru
          _
        %p1752 = scmp.lt.s32.totalorder %s37, 1
        // Predicated region
        $region101: #{tpu_custom_call.1} parent=51 // pred_check
          %p1753 = pneg %p1752
        $region102: #{tpu_custom_call.1} parent=51 // pred_check_branch
          %1755 = sbr.rel (%p1753) target = $region104
        $region103: #{tpu_custom_call.1} parent=51 // pred_region
          %v1756 = vmul.f32 %v1745, %v1745
          %v1757 = vmul.f32 %v1745, %v1756
          %v1758 = vmul.f32 %v1757, 0.044715
          %v1759 = vadd.f32 %v1745, %v1758
          %v1760 = vmul.f32 %v1759, 0.7978846
          %v1761 = vtanh.pop %v1760
          %v1762 = vadd.f32 %v1761, 1.0
          %v1763 = vmul.f32 %v1762, 0.5
          %v1764 = vmul.f32 %v1745, %v1763
          %s1765 = scalar_lea.vmem [#allocation2], %s878
          %1766 = vst.msk [vmem:[%s1765] sm:$0xff] %vm1045, %v1764
        $region104: #{tpu_custom_call.1} parent=51 // pred_fallthru
          _
        // Predicated region
        $region105: #{tpu_custom_call.1} parent=51 // pred_check
          %p1767 = pneg %p261
        $region106: #{tpu_custom_call.1} parent=51 // pred_check_branch
          %1769 = sbr.rel (%p1767) target = $region108
        $region107: #{tpu_custom_call.1} parent=51 // pred_region
          %s1771 = ssub.s32 256, 256
          %1772 = vsyncadd [#allocation8], %s1771
          %s1773 = sshll.u32 [#allocation20], 4
          %s1774 = int_to_ptr.vmem [resolvable:$true] %s1773
          %1779 = dma.vmem_to_hbm [thread:$0]  %s1774, 256, %s8, [#allocation8], 128, 128, 8
        $region108: #{tpu_custom_call.1} parent=51 // pred_fallthru
          _
        // Predicated region
        $region109: #{tpu_custom_call.1} parent=51 // pred_check
          %p1780 = pneg %p261
        $region110: #{tpu_custom_call.1} parent=51 // pred_check_branch
          %1782 = sbr.rel (%p1780) target = $region112
        $region111: #{tpu_custom_call.1} parent=51 // pred_region
          %1783 = dma.done [#allocation8], 256
        $region112: #{tpu_custom_call.1} parent=51 // pred_fallthru
          _
      $region52: #{tpu_custom_call.1} parent=5 // pred_fallthru
        _
      %p1784 = scmp.le.s32.totalorder 2, %s28
      // Predicated region
      $region113: #{tpu_custom_call.1} parent=5 // pred_check
        %p1785 = pneg %p1784
      $region114: #{tpu_custom_call.1} parent=5 // pred_check_branch
        %1787 = sbr.rel (%p1785) target = $region116
      $region115: #{tpu_custom_call.1} parent=5 // pred_region
        %s1788 = ssub.s32 %s28, 2
      $region116: #{tpu_custom_call.1} parent=5 // pred_fallthru
        _
    $region6: #{tpu_custom_call.1} parent=1 // loop_footer
      %s32 = sadd.s32 1, %s28
    $region7: #{tpu_custom_call.1} parent=1 // loop_footer_branch
      %27 = sbr.rel target = $region3
    $region8: #{tpu_custom_call.1} parent=1 // loop_exit
      _
    %1789 = vsyncpa [#allocation7], 1
    %s1790 = scalar_lea.sflag [#allocation7], 1
    %1791 = vsyncpa %s1790, 1
    %1792 = vsyncpa [#allocation10], 1
    %s1793 = scalar_lea.sflag [#allocation10], 1
    %1794 = vsyncpa %s1793, 1
    %1795 = vsyncpa [#allocation13], 1
    %s1796 = scalar_lea.sflag [#allocation13], 1
    %1797 = vsyncpa %s1796, 1
    %1798 = vsyncpa [#allocation16], 1
    %s1799 = scalar_lea.sflag [#allocation16], 1
    %1800 = vsyncpa %s1799, 1
    %1801 = vsyncpa [#allocation19], 1
    %s1802 = scalar_lea.sflag [#allocation19], 1
    %1803 = vsyncpa %s1802, 1
    %1804 = vsyncpa [#allocation8], 1
    %s1805 = scalar_lea.sflag [#allocation8], 1
    %1806 = vsyncpa %s1805, 1

</llo_original>
